<compile_context>
chip_gen: v7x
topology: tpu7x:2x2x1
jax: 0.10.0
libtpu: 0.0.40
codegen_flags: <defaults>
</compile_context>

<pallas_src>
import jax
import jax.numpy as jnp
from jax.experimental import pallas as pl
from jax.experimental.pallas import tpu as pltpu

D_IN = 128
D_H1 = 57 * 8        # 456 (logical)
D_H2 = 50 * 8        # 400 (logical)
D_OUT = 128
D_H1P = 512          # padded to lane multiple
D_H2P = 512          # padded to lane multiple

DEFAULT_TILE_B = 1024  # rows per grid step (sweep 512-2048)


def _round_up(a, m):
    return ((a + m - 1) // m) * m


def _mlp_kernel(x_ref, w1_ref, b1_ref, w2_ref, b2_ref, w3_ref, b3_ref, o_ref):
    # feature: Linear(128 -> 456) + ReLU   (padded to 512 lanes)
    x = x_ref[...].astype(jnp.bfloat16)
    h1 = jnp.dot(x, w1_ref[...],
                 preferred_element_type=jnp.float32).astype(jnp.bfloat16)
    h1 = jnp.maximum(h1 + b1_ref[...], jnp.bfloat16(0))
    # feature: Linear(456 -> 400) + ReLU   (padded to 512 lanes)
    h2 = jnp.dot(h1, w2_ref[...],
                 preferred_element_type=jnp.float32).astype(jnp.bfloat16)
    h2 = jnp.maximum(h2 + b2_ref[...], jnp.bfloat16(0))
    # .view(-1, 400) is a no-op for a [B, 400] activation.
    # decoder: Dropout + Linear(400 -> 128)
    # TODO(synk): Dropout implemented as inference-mode identity (training-mode
    # p=0.5 masking would need pltpu.prng_* if ever required).
    h3 = jnp.dot(h2, w3_ref[...], preferred_element_type=jnp.float32)
    h3 = h3 + b3_ref[...]
    o_ref[...] = jax.nn.sigmoid(h3)


def mlp_forward(x, kernel_params, tile_b=DEFAULT_TILE_B):
    """x: [B, 128] f32.  kernel_params: padded params from prepare_params."""
    w1, b1, w2, b2, w3, b3 = kernel_params
    B = x.shape[0]

    # Batch tile: multiple of 8 sublanes, capped at tile_b. No wrapper-side pad;
    # Pallas clamps the final partial block (rows are independent).
    tb = min(tile_b, _round_up(B, 8))
    tb = _round_up(tb, 8)
    # Ensure >=2 grid steps when the batch allows it, so both v7x TCs get work.
    if pl.cdiv(B, tb) == 1 and B > 8:
        tb = _round_up(pl.cdiv(B, 2), 8)
    grid_b = pl.cdiv(B, tb)

    # Advisory cost estimate for XLA's scheduler around the custom call.
    flops = 2 * B * (D_IN * D_H1P + D_H1P * D_H2P + D_H2P * D_OUT)
    param_bytes = (D_IN * D_H1P + D_H1P * D_H2P + D_H2P * D_OUT) * 2 \
        + (D_H1P + D_H2P) * 2 + D_OUT * 4
    bytes_accessed = B * (D_IN + D_OUT) * 4 + param_bytes
    cost = pl.CostEstimate(flops=flops, bytes_accessed=bytes_accessed,
                           transcendentals=B * D_OUT)

    resident = lambda shape: pl.BlockSpec(shape, lambda i: (0, 0))
    out = pl.pallas_call(
        _mlp_kernel,
        out_shape=jax.ShapeDtypeStruct((B, D_OUT), jnp.float32),
        grid=(grid_b,),
        in_specs=[
            pl.BlockSpec((tb, D_IN), lambda i: (i, 0)),      # x: tiled over batch
            resident((D_IN, D_H1P)), resident((1, D_H1P)),   # W1, b1 (VMEM-resident)
            resident((D_H1P, D_H2P)), resident((1, D_H2P)),  # W2, b2
            resident((D_H2P, D_OUT)), resident((1, D_OUT)),  # W3, b3
        ],
        out_specs=pl.BlockSpec((tb, D_OUT), lambda i: (i, 0)),
        compiler_params=pltpu.CompilerParams(
            dimension_semantics=("parallel",),
            vmem_limit_bytes=32 << 20,
        ),
        cost_estimate=cost,
    )(x, w1, b1, w2, b2, w3, b3)
    return out


def init_params(key):
    """Deterministic init mimicking torch.nn.Linear defaults (uniform +-1/sqrt(fan_in)).

    Returns logical (unpadded) f32 params with weights stored [in, out]
    (transposed vs. PyTorch's [out, in]); biases stored [1, out].
    """
    ks = jax.random.split(key, 6)

    def linear(kw, kb, fan_in, fan_out):
        bound = 1.0 / (fan_in ** 0.5)
        w = jax.random.uniform(kw, (fan_in, fan_out), jnp.float32, -bound, bound)
        b = jax.random.uniform(kb, (1, fan_out), jnp.float32, -bound, bound)
        return w, b

    w1, b1 = linear(ks[0], ks[1], D_IN, D_H1)
    w2, b2 = linear(ks[2], ks[3], D_H1, D_H2)
    w3, b3 = linear(ks[4], ks[5], D_H2, D_OUT)
    return (w1, b1, w2, b2, w3, b3)


def prepare_params(params):
    """Zero-pad hidden dims to 512 lanes; weights + hidden biases in bf16.

    Padding is numerically exact: padded hidden units have zero weight and zero
    bias, so they stay zero through ReLU and contribute nothing downstream.
    """
    w1, b1, w2, b2, w3, b3 = params
    w1p = jnp.pad(w1, ((0, 0), (0, D_H1P - D_H1))).astype(jnp.bfloat16)
    b1p = jnp.pad(b1, ((0, 0), (0, D_H1P - D_H1))).astype(jnp.bfloat16)
    w2p = jnp.pad(w2, ((0, D_H1P - D_H1), (0, D_H2P - D_H2))).astype(jnp.bfloat16)
    b2p = jnp.pad(b2, ((0, 0), (0, D_H2P - D_H2))).astype(jnp.bfloat16)
    w3p = jnp.pad(w3, ((0, D_H2P - D_H2), (0, 0))).astype(jnp.bfloat16)
    b3p = b3  # final bias stays f32
    return (w1p, b1p, w2p, b2p, w3p, b3p)


def mlp_reference_f32(x, params):
    """Exact f32 semantics of the PyTorch module (eval mode)."""
    w1, b1, w2, b2, w3, b3 = params
    h1 = jnp.maximum(x @ w1 + b1, 0.0)
    h2 = jnp.maximum(h1 @ w2 + b2, 0.0)
    h3 = h2.reshape(-1, D_H2) @ w3 + b3
    return jax.nn.sigmoid(h3)


def mlp_reference_mixed(x, kernel_params):
    """Same mixed-precision path as the kernel (bf16 operands/intermediates,
    f32 matmul accumulation, f32 final bias + sigmoid)."""
    w1, b1, w2, b2, w3, b3 = kernel_params
    dot = lambda a, w: jnp.dot(a, w, preferred_element_type=jnp.float32)
    h1 = dot(x.astype(jnp.bfloat16), w1).astype(jnp.bfloat16)
    h1 = jnp.maximum(h1 + b1, jnp.bfloat16(0))
    h2 = dot(h1, w2).astype(jnp.bfloat16)
    h2 = jnp.maximum(h2 + b2, jnp.bfloat16(0))
    h3 = dot(h2, w3) + b3
    return jax.nn.sigmoid(h3)


if __name__ == "__main__":
    key = jax.random.PRNGKey(0)
    k_x, k_p = jax.random.split(key)

    B = 8
    x = jax.random.normal(k_x, (B, D_IN), jnp.float32)
    params = init_params(k_p)
    kernel_params = prepare_params(params)

    out = mlp_forward(x, kernel_params)
    out = jax.block_until_ready(out)
    assert out.shape == (B, D_OUT)

    # Tight check vs. a pure-JAX version of the same mixed-precision math.
    ref_mixed = mlp_reference_mixed(x, kernel_params)
    assert jnp.allclose(out, ref_mixed, atol=2e-3, rtol=2e-3), (
        float(jnp.max(jnp.abs(out - ref_mixed))))

    # Loose check vs. the exact f32 module semantics (bf16 weights/intermediates
    # add ~0.5% relative error on the logits; sigmoid compresses it further).
    ref_f32 = mlp_reference_f32(x, params)
    assert jnp.allclose(out, ref_f32, atol=3e-2, rtol=3e-2), (
        float(jnp.max(jnp.abs(out - ref_f32))))

    # Also exercise a multi-step grid (partial final block, no wrapper pad).
    B2 = 300
    x2 = jax.random.normal(k_x, (B2, D_IN), jnp.float32)
    out2 = jax.block_until_ready(mlp_forward(x2, kernel_params, tile_b=128))
    ref2 = mlp_reference_mixed(x2, kernel_params)
    assert out2.shape == (B2, D_OUT)
    assert jnp.allclose(out2, ref2, atol=2e-3, rtol=2e-3), (
        float(jnp.max(jnp.abs(out2 - ref2))))

    print("KERNEL_OK")
</pallas_src>

<mosaic_0001>
module attributes {stable_mosaic.version = 11 : i64} {
  func.func @_mlp_kernel(%arg0: i32, %arg1: memref<8x128xf32, #tpu.memory_space<vmem>>, %arg2: memref<128x512xbf16, #tpu.memory_space<vmem>>, %arg3: memref<1x512xbf16, #tpu.memory_space<vmem>>, %arg4: memref<512x512xbf16, #tpu.memory_space<vmem>>, %arg5: memref<1x512xbf16, #tpu.memory_space<vmem>>, %arg6: memref<512x128xbf16, #tpu.memory_space<vmem>>, %arg7: memref<1x128xf32, #tpu.memory_space<vmem>>, %arg8: memref<8x128xf32, #tpu.memory_space<vmem>>) attributes {dimension_semantics = [#tpu.dimension_semantics<parallel>], iteration_bounds = array<i64: 1>, scalar_prefetch = 0 : i64, scratch_operands = 0 : i64, tpu.core_type = #tpu.core_type<tc>, window_params = [{transform_indices = @transform_0, window_bounds = array<i64: 8, 128>}, {pipeline_mode = #tpu.pipeline_mode<synchronous>, transform_indices = @transform_1, window_bounds = array<i64: 128, 512>}, {pipeline_mode = #tpu.pipeline_mode<synchronous>, transform_indices = @transform_2, window_bounds = array<i64: 1, 512>}, {pipeline_mode = #tpu.pipeline_mode<synchronous>, transform_indices = @transform_3, window_bounds = array<i64: 512, 512>}, {pipeline_mode = #tpu.pipeline_mode<synchronous>, transform_indices = @transform_4, window_bounds = array<i64: 1, 512>}, {pipeline_mode = #tpu.pipeline_mode<synchronous>, transform_indices = @transform_5, window_bounds = array<i64: 512, 128>}, {pipeline_mode = #tpu.pipeline_mode<synchronous>, transform_indices = @transform_6, window_bounds = array<i64: 1, 128>}, {transform_indices = @transform_7, window_bounds = array<i64: 8, 128>}]} {
    %c0 = arith.constant 0 : index
    %c0_0 = arith.constant 0 : index
    %0 = vector.load %arg1[%c0, %c0_0] : memref<8x128xf32, #tpu.memory_space<vmem>>, vector<8x128xf32>
    %1 = arith.truncf %0 : vector<8x128xf32> to vector<8x128xbf16>
    %c0_1 = arith.constant 0 : index
    %c0_2 = arith.constant 0 : index
    %2 = vector.load %arg2[%c0_1, %c0_2] : memref<128x512xbf16, #tpu.memory_space<vmem>>, vector<128x512xbf16>
    %cst = arith.constant dense<0.000000e+00> : vector<8x512xf32>
    %3 = tpu.matmul %1, %2, %cst {dimension_numbers = #tpu.dot_dimension_numbers<[1], [0], [0], [1], [0, 0, 1, 1], [], []>} : vector<8x128xbf16>, vector<128x512xbf16>, vector<8x512xf32> -> vector<8x512xf32>
    %4 = arith.truncf %3 : vector<8x512xf32> to vector<8x512xbf16>
    %c0_3 = arith.constant 0 : index
    %c0_4 = arith.constant 0 : index
    %5 = vector.load %arg3[%c0_3, %c0_4] : memref<1x512xbf16, #tpu.memory_space<vmem>>, vector<1x512xbf16>
    %6 = vector.broadcast %5 : vector<1x512xbf16> to vector<8x512xbf16>
    %7 = arith.addf %4, %6 : vector<8x512xbf16>
    %cst_5 = arith.constant 0.000000e+00 : bf16
    %8 = vector.broadcast %cst_5 : bf16 to vector<8x512xbf16>
    %9 = arith.maximumf %7, %8 : vector<8x512xbf16>
    %c0_6 = arith.constant 0 : index
    %c0_7 = arith.constant 0 : index
    %10 = vector.load %arg4[%c0_6, %c0_7] : memref<512x512xbf16, #tpu.memory_space<vmem>>, vector<512x512xbf16>
    %cst_8 = arith.constant dense<0.000000e+00> : vector<8x512xf32>
    %11 = tpu.matmul %9, %10, %cst_8 {dimension_numbers = #tpu.dot_dimension_numbers<[1], [0], [0], [1], [0, 0, 1, 1], [], []>} : vector<8x512xbf16>, vector<512x512xbf16>, vector<8x512xf32> -> vector<8x512xf32>
    %12 = arith.truncf %11 : vector<8x512xf32> to vector<8x512xbf16>
    %c0_9 = arith.constant 0 : index
    %c0_10 = arith.constant 0 : index
    %13 = vector.load %arg5[%c0_9, %c0_10] : memref<1x512xbf16, #tpu.memory_space<vmem>>, vector<1x512xbf16>
    %14 = vector.broadcast %13 : vector<1x512xbf16> to vector<8x512xbf16>
    %15 = arith.addf %12, %14 : vector<8x512xbf16>
    %cst_11 = arith.constant 0.000000e+00 : bf16
    %16 = vector.broadcast %cst_11 : bf16 to vector<8x512xbf16>
    %17 = arith.maximumf %15, %16 : vector<8x512xbf16>
    %c0_12 = arith.constant 0 : index
    %c0_13 = arith.constant 0 : index
    %18 = vector.load %arg6[%c0_12, %c0_13] : memref<512x128xbf16, #tpu.memory_space<vmem>>, vector<512x128xbf16>
    %cst_14 = arith.constant dense<0.000000e+00> : vector<8x128xf32>
    %19 = tpu.matmul %17, %18, %cst_14 {dimension_numbers = #tpu.dot_dimension_numbers<[1], [0], [0], [1], [0, 0, 1, 1], [], []>} : vector<8x512xbf16>, vector<512x128xbf16>, vector<8x128xf32> -> vector<8x128xf32>
    %c0_15 = arith.constant 0 : index
    %c0_16 = arith.constant 0 : index
    %20 = vector.load %arg7[%c0_15, %c0_16] : memref<1x128xf32, #tpu.memory_space<vmem>>, vector<1x128xf32>
    %21 = vector.broadcast %20 : vector<1x128xf32> to vector<8x128xf32>
    %22 = arith.addf %19, %21 : vector<8x128xf32>
    %23 = arith.negf %22 : vector<8x128xf32>
    %24 = math.exp %23 : vector<8x128xf32>
    %cst_17 = arith.constant 1.000000e+00 : f32
    %25 = vector.broadcast %cst_17 : f32 to vector<8x128xf32>
    %26 = arith.addf %25, %24 : vector<8x128xf32>
    %27 = arith.divf %25, %26 : vector<8x128xf32>
    %c0_18 = arith.constant 0 : index
    %c0_19 = arith.constant 0 : index
    %28 = vector.load %arg8[%c0_18, %c0_19] : memref<8x128xf32, #tpu.memory_space<vmem>>, vector<8x128xf32>
    tpu.vector_store %arg8[%c0_18, %c0_19], %27 {strides = array<i32>} : memref<8x128xf32, #tpu.memory_space<vmem>>, vector<8x128xf32>,
    return
  }
  func.func @transform_0(%arg0: i32) -> (i32, i32) {
    %c0_i32 = arith.constant 0 : i32
    %c0_i32_0 = arith.constant 0 : i32
    return %arg0, %c0_i32 : i32, i32
  }
  func.func @transform_1(%arg0: i32) -> (i32, i32) {
    %c0_i32 = arith.constant 0 : i32
    %c0_i32_0 = arith.constant 0 : i32
    %c0_i32_1 = arith.constant 0 : i32
    return %c0_i32, %c0_i32_0 : i32, i32
  }
  func.func @transform_2(%arg0: i32) -> (i32, i32) {
    %c0_i32 = arith.constant 0 : i32
    %c0_i32_0 = arith.constant 0 : i32
    %c0_i32_1 = arith.constant 0 : i32
    return %c0_i32, %c0_i32_0 : i32, i32
  }
  func.func @transform_3(%arg0: i32) -> (i32, i32) {
    %c0_i32 = arith.constant 0 : i32
    %c0_i32_0 = arith.constant 0 : i32
    %c0_i32_1 = arith.constant 0 : i32
    return %c0_i32, %c0_i32_0 : i32, i32
  }
  func.func @transform_4(%arg0: i32) -> (i32, i32) {
    %c0_i32 = arith.constant 0 : i32
    %c0_i32_0 = arith.constant 0 : i32
    %c0_i32_1 = arith.constant 0 : i32
    return %c0_i32, %c0_i32_0 : i32, i32
  }
  func.func @transform_5(%arg0: i32) -> (i32, i32) {
    %c0_i32 = arith.constant 0 : i32
    %c0_i32_0 = arith.constant 0 : i32
    %c0_i32_1 = arith.constant 0 : i32
    return %c0_i32, %c0_i32_0 : i32, i32
  }
  func.func @transform_6(%arg0: i32) -> (i32, i32) {
    %c0_i32 = arith.constant 0 : i32
    %c0_i32_0 = arith.constant 0 : i32
    %c0_i32_1 = arith.constant 0 : i32
    return %c0_i32, %c0_i32_0 : i32, i32
  }
  func.func @transform_7(%arg0: i32) -> (i32, i32) {
    %c0_i32 = arith.constant 0 : i32
    %c0_i32_0 = arith.constant 0 : i32
    return %arg0, %c0_i32 : i32, i32
  }
}

</mosaic_0001>

<llo_original>
// kernel: tpu_custom_call.1
$region0: #{tpu_custom_call.1}
  #allocation0 [shape = 'u32[]', space=smem, size = 0x4, offset = 0x4, fixed_abs, tag = 'smem constant byte address 0x4 - core index']
  #allocation1 [shape = 'u32[144,128]{1,0:T(1,128)}', space=vmem, size = 0x12000, scoped, tag = 'internal scratch']
  %s0 = inlined_call_operand.hbm [shape: f32[8,128], index: 0, kind: input, shape index: {}]
  %s1 = inlined_call_operand.hbm [shape: bf16[128,512], index: 1, kind: input, shape index: {}]
  %s2 = inlined_call_operand.vmem [shape: bf16[1,512], index: 2, kind: input, shape index: {}]
  %s3 = inlined_call_operand.hbm [shape: bf16[512,512], index: 3, kind: input, shape index: {}]
  %s4 = inlined_call_operand.vmem [shape: bf16[1,512], index: 4, kind: input, shape index: {}]
  %s5 = inlined_call_operand.hbm [shape: bf16[512,128], index: 5, kind: input, shape index: {}]
  %s6 = inlined_call_operand.vmem [shape: f32[1,128], index: 6, kind: input, shape index: {}]
  %s7 = inlined_call_operand.hbm [shape: f32[8,128], index: 7, kind: output, shape index: {}]
  %s8 = sld [smem:[#allocation0]]
  $region54: #{tpu_custom_call.1} parent=0
    _
  %s10 = ssub.s32 1, %s8
  %s11 = scalar_select 0, %s10, %s8
  $region1: #{tpu_custom_call.1} parent=0
    #allocation2 [shape = 'u8[4096]{0}', space=vmem, size = 0x1000, scoped, tag = 'input window, operand 0, single buffered']
    #allocation3 [shape = 's32[1]{0}', space=sflag, size = 0x4, scoped, tag = 'scoped memory for tpu_custom_call.1']
    #allocation4 [shape = 's32[1]{0}', space=sflag, size = 0x4, scoped, tag = 'scoped memory for tpu_custom_call.1']
    #allocation5 [shape = 'u8[131072]{0}', space=vmem, size = 0x20000, scoped, tag = 'input window, operand 1, single buffered']
    #allocation6 [shape = 's32[1]{0}', space=sflag, size = 0x4, scoped, tag = 'scoped memory for tpu_custom_call.1']
    #allocation7 [shape = 'u8[524288]{0}', space=vmem, size = 0x80000, scoped, tag = 'input window, operand 3, single buffered']
    #allocation8 [shape = 'u8[131072]{0}', space=vmem, size = 0x20000, scoped, tag = 'input window, operand 5, single buffered']
    #allocation9 [shape = 's32[1]{0}', space=sflag, size = 0x4, scoped, tag = 'scoped memory for tpu_custom_call.1']
    #allocation10 [shape = 'u8[4096]{0}', space=vmem, size = 0x1000, scoped, tag = 'output window, operand 0, single buffered']
    %12 = vsyncpa [#allocation3], 0
    %13 = vsyncpa [#allocation6], 0
    %14 = vsyncpa [#allocation9], 0
    %15 = vsyncpa [#allocation4], 0
    // Predicated region
    $region2: #{tpu_custom_call.1} parent=1 // pred_check
      _
    $region3: #{tpu_custom_call.1} parent=1 // pred_check_branch
      %17 = sbr.rel (0) target = $region5
    $region4: #{tpu_custom_call.1} parent=1 // pred_region
      %s19 = ssub.s32 128, 128
      %20 = vsyncadd [#allocation3], %s19
      %s22 = sshll.u32 [#allocation2], 4
      %s23 = int_to_ptr.vmem [resolvable:$true] %s22
      %25 = dma.hbm_to_vmem [thread:$0]  %s0, 128, %s23, [#allocation3]
    $region5: #{tpu_custom_call.1} parent=1 // pred_fallthru
      _
    // Predicated region
    $region6: #{tpu_custom_call.1} parent=1 // pred_check
      _
    $region7: #{tpu_custom_call.1} parent=1 // pred_check_branch
      %27 = sbr.rel (0) target = $region9
    $region8: #{tpu_custom_call.1} parent=1 // pred_region
      %s29 = ssub.s32 4096, 4096
      %30 = vsyncadd [#allocation6], %s29
      %s31 = sshll.u32 [#allocation5], 4
      %s32 = int_to_ptr.vmem [resolvable:$true] %s31
      %37 = dma.hbm_to_vmem [thread:$0]  %s1, 4096, %s32, [#allocation6], 256, 256, 16
    $region9: #{tpu_custom_call.1} parent=1 // pred_fallthru
      _
    // Predicated region
    $region10: #{tpu_custom_call.1} parent=1 // pred_check
      _
    $region11: #{tpu_custom_call.1} parent=1 // pred_check_branch
      %39 = sbr.rel (0) target = $region13
    $region12: #{tpu_custom_call.1} parent=1 // pred_region
      _
    $region13: #{tpu_custom_call.1} parent=1 // pred_fallthru
      _
    // Predicated region
    $region14: #{tpu_custom_call.1} parent=1 // pred_check
      _
    $region15: #{tpu_custom_call.1} parent=1 // pred_check_branch
      %41 = sbr.rel (0) target = $region17
    $region16: #{tpu_custom_call.1} parent=1 // pred_region
      %s43 = ssub.s32 16384, 16384
      %44 = vsyncadd [#allocation6], %s43
      %s45 = sshll.u32 [#allocation7], 4
      %s46 = int_to_ptr.vmem [resolvable:$true] %s45
      %51 = dma.hbm_to_vmem [thread:$0]  %s3, 16384, %s46, [#allocation6], 256, 256, 16
    $region17: #{tpu_custom_call.1} parent=1 // pred_fallthru
      _
    // Predicated region
    $region18: #{tpu_custom_call.1} parent=1 // pred_check
      _
    $region19: #{tpu_custom_call.1} parent=1 // pred_check_branch
      %53 = sbr.rel (0) target = $region21
    $region20: #{tpu_custom_call.1} parent=1 // pred_region
      _
    $region21: #{tpu_custom_call.1} parent=1 // pred_fallthru
      _
    // Predicated region
    $region22: #{tpu_custom_call.1} parent=1 // pred_check
      _
    $region23: #{tpu_custom_call.1} parent=1 // pred_check_branch
      %55 = sbr.rel (0) target = $region25
    $region24: #{tpu_custom_call.1} parent=1 // pred_region
      %s57 = ssub.s32 4096, 4096
      %58 = vsyncadd [#allocation9], %s57
      %s59 = sshll.u32 [#allocation8], 4
      %s60 = int_to_ptr.vmem [resolvable:$true] %s59
      %65 = dma.hbm_to_vmem [thread:$0]  %s5, 4096, %s60, [#allocation9], 64, 64, 4
    $region25: #{tpu_custom_call.1} parent=1 // pred_fallthru
      _
    // Predicated region
    $region26: #{tpu_custom_call.1} parent=1 // pred_check
      _
    $region27: #{tpu_custom_call.1} parent=1 // pred_check_branch
      %67 = sbr.rel (0) target = $region29
    $region28: #{tpu_custom_call.1} parent=1 // pred_region
      _
    $region29: #{tpu_custom_call.1} parent=1 // pred_fallthru
      _
    // Predicated region
    $region30: #{tpu_custom_call.1} parent=1 // pred_check
      _
    $region31: #{tpu_custom_call.1} parent=1 // pred_check_branch
      %69 = sbr.rel (0) target = $region33
    $region32: #{tpu_custom_call.1} parent=1 // pred_region
      %70 = dma.done [#allocation3], 128
    $region33: #{tpu_custom_call.1} parent=1 // pred_fallthru
      _
    // Predicated region
    $region34: #{tpu_custom_call.1} parent=1 // pred_check
      _
    $region35: #{tpu_custom_call.1} parent=1 // pred_check_branch
      %72 = sbr.rel (0) target = $region37
    $region36: #{tpu_custom_call.1} parent=1 // pred_region
      %73 = dma.done [#allocation6], 4096
    $region37: #{tpu_custom_call.1} parent=1 // pred_fallthru
      _
    // Predicated region
    $region38: #{tpu_custom_call.1} parent=1 // pred_check
      _
    $region39: #{tpu_custom_call.1} parent=1 // pred_check_branch
      %75 = sbr.rel (0) target = $region41
    $region40: #{tpu_custom_call.1} parent=1 // pred_region
      %76 = dma.done [#allocation6], 16384
    $region41: #{tpu_custom_call.1} parent=1 // pred_fallthru
      _
    // Predicated region
    $region42: #{tpu_custom_call.1} parent=1 // pred_check
      _
    $region43: #{tpu_custom_call.1} parent=1 // pred_check_branch
      %78 = sbr.rel (0) target = $region45
    $region44: #{tpu_custom_call.1} parent=1 // pred_region
      %79 = dma.done [#allocation9], 4096
    $region45: #{tpu_custom_call.1} parent=1 // pred_fallthru
      _
    %v81 = vld [vmem:[#allocation2] sm:$0xff]
    %v82 = vpack.c.bf16 %v81, %v81
    %v83 = vld [vmem:[#allocation5] sm:$0xff]
    %v84 = vld [vmem:[#allocation5 + $0x8] sm:$0xff]
    %v85 = vld [vmem:[#allocation5 + $0x10] sm:$0xff]
    %v86 = vld [vmem:[#allocation5 + $0x18] sm:$0xff]
    %v87 = vld [vmem:[#allocation5 + $0x20] sm:$0xff]
    %v88 = vld [vmem:[#allocation5 + $0x28] sm:$0xff]
    %v89 = vld [vmem:[#allocation5 + $0x30] sm:$0xff]
    %v90 = vld [vmem:[#allocation5 + $0x38] sm:$0xff]
    %v91 = vld [vmem:[#allocation5 + $0x40] sm:$0xff]
    %v92 = vld [vmem:[#allocation5 + $0x48] sm:$0xff]
    %v93 = vld [vmem:[#allocation5 + $0x50] sm:$0xff]
    %v94 = vld [vmem:[#allocation5 + $0x58] sm:$0xff]
    %v95 = vld [vmem:[#allocation5 + $0x60] sm:$0xff]
    %v96 = vld [vmem:[#allocation5 + $0x68] sm:$0xff]
    %v97 = vld [vmem:[#allocation5 + $0x70] sm:$0xff]
    %v98 = vld [vmem:[#allocation5 + $0x78] sm:$0xff]
    %v99 = vld [vmem:[#allocation5 + $0x80] sm:$0xff]
    %v100 = vld [vmem:[#allocation5 + $0x88] sm:$0xff]
    %v101 = vld [vmem:[#allocation5 + $0x90] sm:$0xff]
    %v102 = vld [vmem:[#allocation5 + $0x98] sm:$0xff]
    %v103 = vld [vmem:[#allocation5 + $0xa0] sm:$0xff]
    %v104 = vld [vmem:[#allocation5 + $0xa8] sm:$0xff]
    %v105 = vld [vmem:[#allocation5 + $0xb0] sm:$0xff]
    %v106 = vld [vmem:[#allocation5 + $0xb8] sm:$0xff]
    %v107 = vld [vmem:[#allocation5 + $0xc0] sm:$0xff]
    %v108 = vld [vmem:[#allocation5 + $0xc8] sm:$0xff]
    %v109 = vld [vmem:[#allocation5 + $0xd0] sm:$0xff]
    %v110 = vld [vmem:[#allocation5 + $0xd8] sm:$0xff]
    %v111 = vld [vmem:[#allocation5 + $0xe0] sm:$0xff]
    %v112 = vld [vmem:[#allocation5 + $0xe8] sm:$0xff]
    %v113 = vld [vmem:[#allocation5 + $0xf0] sm:$0xff]
    %v114 = vld [vmem:[#allocation5 + $0xf8] sm:$0xff]
    %v147 = vunpack.c.l.b16 %v83
    %v148 = vunpack.c.h.b16 %v83
    %v149 = vunpack.c.l.b16 %v84
    %v150 = vunpack.c.h.b16 %v84
    %v151 = vunpack.c.l.b16 %v85
    %v152 = vunpack.c.h.b16 %v85
    %v153 = vunpack.c.l.b16 %v86
    %v154 = vunpack.c.h.b16 %v86
    %v155 = vunpack.c.l.b16 %v87
    %v156 = vunpack.c.h.b16 %v87
    %v157 = vunpack.c.l.b16 %v88
    %v158 = vunpack.c.h.b16 %v88
    %v159 = vunpack.c.l.b16 %v89
    %v160 = vunpack.c.h.b16 %v89
    %v161 = vunpack.c.l.b16 %v90
    %v162 = vunpack.c.h.b16 %v90
    %v163 = vunpack.c.l.b16 %v91
    %v164 = vunpack.c.h.b16 %v91
    %v165 = vunpack.c.l.b16 %v92
    %v166 = vunpack.c.h.b16 %v92
    %v167 = vunpack.c.l.b16 %v93
    %v168 = vunpack.c.h.b16 %v93
    %v169 = vunpack.c.l.b16 %v94
    %v170 = vunpack.c.h.b16 %v94
    %v171 = vunpack.c.l.b16 %v95
    %v172 = vunpack.c.h.b16 %v95
    %v173 = vunpack.c.l.b16 %v96
    %v174 = vunpack.c.h.b16 %v96
    %v175 = vunpack.c.l.b16 %v97
    %v176 = vunpack.c.h.b16 %v97
    %v177 = vunpack.c.l.b16 %v98
    %v178 = vunpack.c.h.b16 %v98
    %v179 = vunpack.c.l.b16 %v99
    %v180 = vunpack.c.h.b16 %v99
    %v181 = vunpack.c.l.b16 %v100
    %v182 = vunpack.c.h.b16 %v100
    %v183 = vunpack.c.l.b16 %v101
    %v184 = vunpack.c.h.b16 %v101
    %v185 = vunpack.c.l.b16 %v102
    %v186 = vunpack.c.h.b16 %v102
    %v187 = vunpack.c.l.b16 %v103
    %v188 = vunpack.c.h.b16 %v103
    %v189 = vunpack.c.l.b16 %v104
    %v190 = vunpack.c.h.b16 %v104
    %v191 = vunpack.c.l.b16 %v105
    %v192 = vunpack.c.h.b16 %v105
    %v193 = vunpack.c.l.b16 %v106
    %v194 = vunpack.c.h.b16 %v106
    %v195 = vunpack.c.l.b16 %v107
    %v196 = vunpack.c.h.b16 %v107
    %v197 = vunpack.c.l.b16 %v108
    %v198 = vunpack.c.h.b16 %v108
    %v199 = vunpack.c.l.b16 %v109
    %v200 = vunpack.c.h.b16 %v109
    %v201 = vunpack.c.l.b16 %v110
    %v202 = vunpack.c.h.b16 %v110
    %v203 = vunpack.c.l.b16 %v111
    %v204 = vunpack.c.h.b16 %v111
    %v205 = vunpack.c.l.b16 %v112
    %v206 = vunpack.c.h.b16 %v112
    %v207 = vunpack.c.l.b16 %v113
    %v208 = vunpack.c.h.b16 %v113
    %v209 = vunpack.c.l.b16 %v114
    %v210 = vunpack.c.h.b16 %v114
    %v211 = vpack.c.b16 %v151, %v147
    %v212 = vpack.c.b16 %v152, %v148
    %v213 = vpack.c.b16 %v153, %v149
    %v214 = vpack.c.b16 %v154, %v150
    %v215 = vpack.c.b16 %v159, %v155
    %v216 = vpack.c.b16 %v160, %v156
    %v217 = vpack.c.b16 %v161, %v157
    %v218 = vpack.c.b16 %v162, %v158
    %v219 = vpack.c.b16 %v167, %v163
    %v220 = vpack.c.b16 %v168, %v164
    %v221 = vpack.c.b16 %v169, %v165
    %v222 = vpack.c.b16 %v170, %v166
    %v223 = vpack.c.b16 %v175, %v171
    %v224 = vpack.c.b16 %v176, %v172
    %v225 = vpack.c.b16 %v177, %v173
    %v226 = vpack.c.b16 %v178, %v174
    %v227 = vpack.c.b16 %v183, %v179
    %v228 = vpack.c.b16 %v184, %v180
    %v229 = vpack.c.b16 %v185, %v181
    %v230 = vpack.c.b16 %v186, %v182
    %v231 = vpack.c.b16 %v191, %v187
    %v232 = vpack.c.b16 %v192, %v188
    %v233 = vpack.c.b16 %v193, %v189
    %v234 = vpack.c.b16 %v194, %v190
    %v235 = vpack.c.b16 %v199, %v195
    %v236 = vpack.c.b16 %v200, %v196
    %v237 = vpack.c.b16 %v201, %v197
    %v238 = vpack.c.b16 %v202, %v198
    %v239 = vpack.c.b16 %v207, %v203
    %v240 = vpack.c.b16 %v208, %v204
    %v241 = vpack.c.b16 %v209, %v205
    %v242 = vpack.c.b16 %v210, %v206
    %275 = vmatprep.subr.bf16.mxu0 %v212
    %276 = vmatpush1.bf16.msra.mxu0 %v211
    %277 = vmatprep.subr.bf16.mxu0 %v216
    %278 = vmatpush1.bf16.msra.mxu0 %v215
    %279 = vmatprep.subr.bf16.mxu0 %v220
    %280 = vmatpush1.bf16.msra.mxu0 %v219
    %281 = vmatprep.subr.bf16.mxu0 %v224
    %282 = vmatpush1.bf16.msra.mxu0 %v223
    %283 = vmatprep.subr.bf16.mxu0 %v228
    %284 = vmatpush1.bf16.msra.mxu0 %v227
    %285 = vmatprep.subr.bf16.mxu0 %v232
    %286 = vmatpush1.bf16.msra.mxu0 %v231
    %287 = vmatprep.subr.bf16.mxu0 %v236
    %288 = vmatpush1.bf16.msra.mxu0 %v235
    %289 = vmatprep.subr.bf16.mxu0 %v240
    %290 = vmatpush1.bf16.msra.mxu0 %v239
    %291 = vmatprep.subr.bf16.mxu0 0
    %292 = vmatpush1.bf16.msra.mxu0 0
    %293 = vmatprep.subr.bf16.mxu0 0
    %294 = vmatpush1.bf16.msra.mxu0 0
    %295 = vmatprep.subr.bf16.mxu0 0
    %296 = vmatpush1.bf16.msra.mxu0 0
    %297 = vmatprep.subr.bf16.mxu0 0
    %298 = vmatpush1.bf16.msra.mxu0 0
    %299 = vmatprep.subr.bf16.mxu0 0
    %300 = vmatpush1.bf16.msra.mxu0 0
    %301 = vmatprep.subr.bf16.mxu0 0
    %302 = vmatpush1.bf16.msra.mxu0 0
    %303 = vmatprep.subr.bf16.mxu0 0
    %304 = vmatpush1.bf16.msra.mxu0 0
    %305 = vmatprep.subr.bf16.mxu0 0
    %306 = vmatpush1.bf16.msra.mxu0 0
    %307 = vmatprep.mubr.bf16.mxu0 0
    %308 = vmatmul.mubr.bf16.gmra.mrb[0].mxu0 %v82
    %v309 = vpop.f32.mrb[0].mxu0
    %v310 = vadd.f32 0.0, %v309
    %v311 = vpop.f32.mrb[0].mxu0
    %v312 = vadd.f32 0.0, %v311
    %v313 = vpop.f32.mrb[0].mxu0
    %v314 = vpop.f32.mrb[0].mxu0
    %315 = vdwg.mxu0
    %316 = vmatprep.subr.bf16.mxu0 %v214
    %317 = vmatpush1.bf16.msra.mxu0 %v213
    %318 = vmatprep.subr.bf16.mxu0 %v218
    %319 = vmatpush1.bf16.msra.mxu0 %v217
    %320 = vmatprep.subr.bf16.mxu0 %v222
    %321 = vmatpush1.bf16.msra.mxu0 %v221
    %322 = vmatprep.subr.bf16.mxu0 %v226
    %323 = vmatpush1.bf16.msra.mxu0 %v225
    %324 = vmatprep.subr.bf16.mxu0 %v230
    %325 = vmatpush1.bf16.msra.mxu0 %v229
    %326 = vmatprep.subr.bf16.mxu0 %v234
    %327 = vmatpush1.bf16.msra.mxu0 %v233
    %328 = vmatprep.subr.bf16.mxu0 %v238
    %329 = vmatpush1.bf16.msra.mxu0 %v237
    %330 = vmatprep.subr.bf16.mxu0 %v242
    %331 = vmatpush1.bf16.msra.mxu0 %v241
    %332 = vmatprep.subr.bf16.mxu0 0
    %333 = vmatpush1.bf16.msra.mxu0 0
    %334 = vmatprep.subr.bf16.mxu0 0
    %335 = vmatpush1.bf16.msra.mxu0 0
    %336 = vmatprep.subr.bf16.mxu0 0
    %337 = vmatpush1.bf16.msra.mxu0 0
    %338 = vmatprep.subr.bf16.mxu0 0
    %339 = vmatpush1.bf16.msra.mxu0 0
    %340 = vmatprep.subr.bf16.mxu0 0
    %341 = vmatpush1.bf16.msra.mxu0 0
    %342 = vmatprep.subr.bf16.mxu0 0
    %343 = vmatpush1.bf16.msra.mxu0 0
    %344 = vmatprep.subr.bf16.mxu0 0
    %345 = vmatpush1.bf16.msra.mxu0 0
    %346 = vmatprep.subr.bf16.mxu0 0
    %347 = vmatpush1.bf16.msra.mxu0 0
    %348 = vmatprep.mubr.bf16.mxu0 0
    %349 = vmatmul.mubr.bf16.gmra.mrb[0].mxu0 %v82
    %v350 = vpop.f32.mrb[0].mxu0
    %v351 = vadd.f32 0.0, %v350
    %v352 = vpop.f32.mrb[0].mxu0
    %v353 = vadd.f32 0.0, %v352
    %v354 = vpop.f32.mrb[0].mxu0
    %v355 = vpop.f32.mrb[0].mxu0
    %356 = vdwg.mxu0
    %v357 = vpack.c.bf16 %v310, %v310
    %v358 = vpack.c.bf16 %v312, %v312
    %v359 = vpack.c.bf16 %v351, %v351
    %v360 = vpack.c.bf16 %v353, %v353
    %v361 = vld [vmem:[%s2] sm:$0xf]
    %v364 = vunpack.c.l.s4 1966171168
    %v365 = vunpack.c.0.s8 %v364
    %v366 = vlaneseq
    %v367 = vshrl.u32 %v366, 7
    %v368 = vsub.s32 %v365, %v367
    %v369 = vrot.slane %v361, %v368
    %v370 = vcombine.high %v369, %v369
    %v372 = vunpack.c.l.s4 1966171168
    %v373 = vunpack.c.0.s8 %v372
    %v374 = vlaneseq
    %v375 = vshrl.u32 %v374, 7
    %v376 = vsub.s32 %v373, %v375
    %v377 = vrot.slane %v369, %v376
    %v379 = vunpack.c.l.s4 1966171168
    %v380 = vunpack.c.0.s8 %v379
    %v381 = vlaneseq
    %v382 = vshrl.u32 %v381, 7
    %v383 = vsub.s32 %v380, %v382
    %v384 = vrot.slane %v370, %v383
    %v385 = vcombine.high %v377, %v377
    %v386 = vcombine.high %v384, %v384
    %v388 = vpack.i.b16 %v377, %v377
    %v390 = vlaneseq
    %v391 = vshrl.u32 %v390, 7
    %v392 = vsub.s32 0, %v391
    %v393 = vrot.slane %v388, %v392
    %v395 = vpack.i.b16 %v384, %v384
    %v397 = vlaneseq
    %v398 = vshrl.u32 %v397, 7
    %v399 = vsub.s32 0, %v398
    %v400 = vrot.slane %v395, %v399
    %v402 = vpack.i.b16 %v385, %v385
    %v404 = vlaneseq
    %v405 = vshrl.u32 %v404, 7
    %v406 = vsub.s32 0, %v405
    %v407 = vrot.slane %v402, %v406
    %v409 = vpack.i.b16 %v386, %v386
    %v411 = vlaneseq
    %v412 = vshrl.u32 %v411, 7
    %v413 = vsub.s32 0, %v412
    %v414 = vrot.slane %v409, %v413
    %v415 = vadd.bf16 %v357, %v393
    %v416 = vadd.bf16 %v358, %v400
    %v417 = vadd.bf16 %v359, %v407
    %v418 = vadd.bf16 %v360, %v414
    %v419 = vmax.bf16 %v415, 0
    %v420 = vmax.bf16 %v416, 0
    %v421 = vmax.bf16 %v417, 0
    %v422 = vmax.bf16 %v418, 0
    %v423 = vld [vmem:[#allocation7] sm:$0xff]
    %v424 = vld [vmem:[#allocation7 + $0x8] sm:$0xff]
    %v425 = vld [vmem:[#allocation7 + $0x10] sm:$0xff]
    %v426 = vld [vmem:[#allocation7 + $0x18] sm:$0xff]
    %v427 = vld [vmem:[#allocation7 + $0x20] sm:$0xff]
    %v428 = vld [vmem:[#allocation7 + $0x28] sm:$0xff]
    %v429 = vld [vmem:[#allocation7 + $0x30] sm:$0xff]
    %v430 = vld [vmem:[#allocation7 + $0x38] sm:$0xff]
    %v431 = vld [vmem:[#allocation7 + $0x40] sm:$0xff]
    %v432 = vld [vmem:[#allocation7 + $0x48] sm:$0xff]
    %v433 = vld [vmem:[#allocation7 + $0x50] sm:$0xff]
    %v434 = vld [vmem:[#allocation7 + $0x58] sm:$0xff]
    %v435 = vld [vmem:[#allocation7 + $0x60] sm:$0xff]
    %v436 = vld [vmem:[#allocation7 + $0x68] sm:$0xff]
    %v437 = vld [vmem:[#allocation7 + $0x70] sm:$0xff]
    %v438 = vld [vmem:[#allocation7 + $0x78] sm:$0xff]
    %v439 = vld [vmem:[#allocation7 + $0x80] sm:$0xff]
    %v440 = vld [vmem:[#allocation7 + $0x88] sm:$0xff]
    %v441 = vld [vmem:[#allocation7 + $0x90] sm:$0xff]
    %v442 = vld [vmem:[#allocation7 + $0x98] sm:$0xff]
    %v443 = vld [vmem:[#allocation7 + $0xa0] sm:$0xff]
    %v444 = vld [vmem:[#allocation7 + $0xa8] sm:$0xff]
    %v445 = vld [vmem:[#allocation7 + $0xb0] sm:$0xff]
    %v446 = vld [vmem:[#allocation7 + $0xb8] sm:$0xff]
    %v447 = vld [vmem:[#allocation7 + $0xc0] sm:$0xff]
    %v448 = vld [vmem:[#allocation7 + $0xc8] sm:$0xff]
    %v449 = vld [vmem:[#allocation7 + $0xd0] sm:$0xff]
    %v450 = vld [vmem:[#allocation7 + $0xd8] sm:$0xff]
    %v451 = vld [vmem:[#allocation7 + $0xe0] sm:$0xff]
    %v452 = vld [vmem:[#allocation7 + $0xe8] sm:$0xff]
    %v453 = vld [vmem:[#allocation7 + $0xf0] sm:$0xff]
    %v454 = vld [vmem:[#allocation7 + $0xf8] sm:$0xff]
    %v455 = vld [vmem:[#allocation7 + $0x100] sm:$0xff]
    %v456 = vld [vmem:[#allocation7 + $0x108] sm:$0xff]
    %v457 = vld [vmem:[#allocation7 + $0x110] sm:$0xff]
    %v458 = vld [vmem:[#allocation7 + $0x118] sm:$0xff]
    %v459 = vld [vmem:[#allocation7 + $0x120] sm:$0xff]
    %v460 = vld [vmem:[#allocation7 + $0x128] sm:$0xff]
    %v461 = vld [vmem:[#allocation7 + $0x130] sm:$0xff]
    %v462 = vld [vmem:[#allocation7 + $0x138] sm:$0xff]
    %v463 = vld [vmem:[#allocation7 + $0x140] sm:$0xff]
    %v464 = vld [vmem:[#allocation7 + $0x148] sm:$0xff]
    %v465 = vld [vmem:[#allocation7 + $0x150] sm:$0xff]
    %v466 = vld [vmem:[#allocation7 + $0x158] sm:$0xff]
    %v467 = vld [vmem:[#allocation7 + $0x160] sm:$0xff]
    %v468 = vld [vmem:[#allocation7 + $0x168] sm:$0xff]
    %v469 = vld [vmem:[#allocation7 + $0x170] sm:$0xff]
    %v470 = vld [vmem:[#allocation7 + $0x178] sm:$0xff]
    %v471 = vld [vmem:[#allocation7 + $0x180] sm:$0xff]
    %v472 = vld [vmem:[#allocation7 + $0x188] sm:$0xff]
    %v473 = vld [vmem:[#allocation7 + $0x190] sm:$0xff]
    %v474 = vld [vmem:[#allocation7 + $0x198] sm:$0xff]
    %v475 = vld [vmem:[#allocation7 + $0x1a0] sm:$0xff]
    %v476 = vld [vmem:[#allocation7 + $0x1a8] sm:$0xff]
    %v477 = vld [vmem:[#allocation7 + $0x1b0] sm:$0xff]
    %v478 = vld [vmem:[#allocation7 + $0x1b8] sm:$0xff]
    %v479 = vld [vmem:[#allocation7 + $0x1c0] sm:$0xff]
    %v480 = vld [vmem:[#allocation7 + $0x1c8] sm:$0xff]
    %v481 = vld [vmem:[#allocation7 + $0x1d0] sm:$0xff]
    %v482 = vld [vmem:[#allocation7 + $0x1d8] sm:$0xff]
    %v483 = vld [vmem:[#allocation7 + $0x1e0] sm:$0xff]
    %v484 = vld [vmem:[#allocation7 + $0x1e8] sm:$0xff]
    %v485 = vld [vmem:[#allocation7 + $0x1f0] sm:$0xff]
    %v486 = vld [vmem:[#allocation7 + $0x1f8] sm:$0xff]
    %v487 = vld [vmem:[#allocation7 + $0x200] sm:$0xff]
    %v488 = vld [vmem:[#allocation7 + $0x208] sm:$0xff]
    %v489 = vld [vmem:[#allocation7 + $0x210] sm:$0xff]
    %v490 = vld [vmem:[#allocation7 + $0x218] sm:$0xff]
    %v491 = vld [vmem:[#allocation7 + $0x220] sm:$0xff]
    %v492 = vld [vmem:[#allocation7 + $0x228] sm:$0xff]
    %v493 = vld [vmem:[#allocation7 + $0x230] sm:$0xff]
    %v494 = vld [vmem:[#allocation7 + $0x238] sm:$0xff]
    %v495 = vld [vmem:[#allocation7 + $0x240] sm:$0xff]
    %v496 = vld [vmem:[#allocation7 + $0x248] sm:$0xff]
    %v497 = vld [vmem:[#allocation7 + $0x250] sm:$0xff]
    %v498 = vld [vmem:[#allocation7 + $0x258] sm:$0xff]
    %v499 = vld [vmem:[#allocation7 + $0x260] sm:$0xff]
    %v500 = vld [vmem:[#allocation7 + $0x268] sm:$0xff]
    %v501 = vld [vmem:[#allocation7 + $0x270] sm:$0xff]
    %v502 = vld [vmem:[#allocation7 + $0x278] sm:$0xff]
    %v503 = vld [vmem:[#allocation7 + $0x280] sm:$0xff]
    %v504 = vld [vmem:[#allocation7 + $0x288] sm:$0xff]
    %v505 = vld [vmem:[#allocation7 + $0x290] sm:$0xff]
    %v506 = vld [vmem:[#allocation7 + $0x298] sm:$0xff]
    %v507 = vld [vmem:[#allocation7 + $0x2a0] sm:$0xff]
    %v508 = vld [vmem:[#allocation7 + $0x2a8] sm:$0xff]
    %v509 = vld [vmem:[#allocation7 + $0x2b0] sm:$0xff]
    %v510 = vld [vmem:[#allocation7 + $0x2b8] sm:$0xff]
    %v511 = vld [vmem:[#allocation7 + $0x2c0] sm:$0xff]
    %v512 = vld [vmem:[#allocation7 + $0x2c8] sm:$0xff]
    %v513 = vld [vmem:[#allocation7 + $0x2d0] sm:$0xff]
    %v514 = vld [vmem:[#allocation7 + $0x2d8] sm:$0xff]
    %v515 = vld [vmem:[#allocation7 + $0x2e0] sm:$0xff]
    %v516 = vld [vmem:[#allocation7 + $0x2e8] sm:$0xff]
    %v517 = vld [vmem:[#allocation7 + $0x2f0] sm:$0xff]
    %v518 = vld [vmem:[#allocation7 + $0x2f8] sm:$0xff]
    %v519 = vld [vmem:[#allocation7 + $0x300] sm:$0xff]
    %v520 = vld [vmem:[#allocation7 + $0x308] sm:$0xff]
    %v521 = vld [vmem:[#allocation7 + $0x310] sm:$0xff]
    %v522 = vld [vmem:[#allocation7 + $0x318] sm:$0xff]
    %v523 = vld [vmem:[#allocation7 + $0x320] sm:$0xff]
    %v524 = vld [vmem:[#allocation7 + $0x328] sm:$0xff]
    %v525 = vld [vmem:[#allocation7 + $0x330] sm:$0xff]
    %v526 = vld [vmem:[#allocation7 + $0x338] sm:$0xff]
    %v527 = vld [vmem:[#allocation7 + $0x340] sm:$0xff]
    %v528 = vld [vmem:[#allocation7 + $0x348] sm:$0xff]
    %v529 = vld [vmem:[#allocation7 + $0x350] sm:$0xff]
    %v530 = vld [vmem:[#allocation7 + $0x358] sm:$0xff]
    %v531 = vld [vmem:[#allocation7 + $0x360] sm:$0xff]
    %v532 = vld [vmem:[#allocation7 + $0x368] sm:$0xff]
    %v533 = vld [vmem:[#allocation7 + $0x370] sm:$0xff]
    %v534 = vld [vmem:[#allocation7 + $0x378] sm:$0xff]
    %v535 = vld [vmem:[#allocation7 + $0x380] sm:$0xff]
    %v536 = vld [vmem:[#allocation7 + $0x388] sm:$0xff]
    %v537 = vld [vmem:[#allocation7 + $0x390] sm:$0xff]
    %v538 = vld [vmem:[#allocation7 + $0x398] sm:$0xff]
    %v539 = vld [vmem:[#allocation7 + $0x3a0] sm:$0xff]
    %v540 = vld [vmem:[#allocation7 + $0x3a8] sm:$0xff]
    %v541 = vld [vmem:[#allocation7 + $0x3b0] sm:$0xff]
    %v542 = vld [vmem:[#allocation7 + $0x3b8] sm:$0xff]
    %v543 = vld [vmem:[#allocation7 + $0x3c0] sm:$0xff]
    %v544 = vld [vmem:[#allocation7 + $0x3c8] sm:$0xff]
    %v545 = vld [vmem:[#allocation7 + $0x3d0] sm:$0xff]
    %v546 = vld [vmem:[#allocation7 + $0x3d8] sm:$0xff]
    %v547 = vld [vmem:[#allocation7 + $0x3e0] sm:$0xff]
    %v548 = vld [vmem:[#allocation7 + $0x3e8] sm:$0xff]
    %v549 = vld [vmem:[#allocation7 + $0x3f0] sm:$0xff]
    %v550 = vld [vmem:[#allocation7 + $0x3f8] sm:$0xff]
    %v679 = vunpack.c.l.b16 %v423
    %v680 = vunpack.c.h.b16 %v423
    %v681 = vunpack.c.l.b16 %v424
    %v682 = vunpack.c.h.b16 %v424
    %v683 = vunpack.c.l.b16 %v425
    %v684 = vunpack.c.h.b16 %v425
    %v685 = vunpack.c.l.b16 %v426
    %v686 = vunpack.c.h.b16 %v426
    %v687 = vunpack.c.l.b16 %v427
    %v688 = vunpack.c.h.b16 %v427
    %v689 = vunpack.c.l.b16 %v428
    %v690 = vunpack.c.h.b16 %v428
    %v691 = vunpack.c.l.b16 %v429
    %v692 = vunpack.c.h.b16 %v429
    %v693 = vunpack.c.l.b16 %v430
    %v694 = vunpack.c.h.b16 %v430
    %v695 = vunpack.c.l.b16 %v431
    %v696 = vunpack.c.h.b16 %v431
    %v697 = vunpack.c.l.b16 %v432
    %v698 = vunpack.c.h.b16 %v432
    %v699 = vunpack.c.l.b16 %v433
    %v700 = vunpack.c.h.b16 %v433
    %v701 = vunpack.c.l.b16 %v434
    %v702 = vunpack.c.h.b16 %v434
    %v703 = vunpack.c.l.b16 %v435
    %v704 = vunpack.c.h.b16 %v435
    %v705 = vunpack.c.l.b16 %v436
    %v706 = vunpack.c.h.b16 %v436
    %v707 = vunpack.c.l.b16 %v437
    %v708 = vunpack.c.h.b16 %v437
    %v709 = vunpack.c.l.b16 %v438
    %v710 = vunpack.c.h.b16 %v438
    %v711 = vunpack.c.l.b16 %v439
    %v712 = vunpack.c.h.b16 %v439
    %v713 = vunpack.c.l.b16 %v440
    %v714 = vunpack.c.h.b16 %v440
    %v715 = vunpack.c.l.b16 %v441
    %v716 = vunpack.c.h.b16 %v441
    %v717 = vunpack.c.l.b16 %v442
    %v718 = vunpack.c.h.b16 %v442
    %v719 = vunpack.c.l.b16 %v443
    %v720 = vunpack.c.h.b16 %v443
    %v721 = vunpack.c.l.b16 %v444
    %v722 = vunpack.c.h.b16 %v444
    %v723 = vunpack.c.l.b16 %v445
    %v724 = vunpack.c.h.b16 %v445
    %v725 = vunpack.c.l.b16 %v446
    %v726 = vunpack.c.h.b16 %v446
    %v727 = vunpack.c.l.b16 %v447
    %v728 = vunpack.c.h.b16 %v447
    %v729 = vunpack.c.l.b16 %v448
    %v730 = vunpack.c.h.b16 %v448
    %v731 = vunpack.c.l.b16 %v449
    %v732 = vunpack.c.h.b16 %v449
    %v733 = vunpack.c.l.b16 %v450
    %v734 = vunpack.c.h.b16 %v450
    %v735 = vunpack.c.l.b16 %v451
    %v736 = vunpack.c.h.b16 %v451
    %v737 = vunpack.c.l.b16 %v452
    %v738 = vunpack.c.h.b16 %v452
    %v739 = vunpack.c.l.b16 %v453
    %v740 = vunpack.c.h.b16 %v453
    %v741 = vunpack.c.l.b16 %v454
    %v742 = vunpack.c.h.b16 %v454
    %v743 = vunpack.c.l.b16 %v455
    %v744 = vunpack.c.h.b16 %v455
    %v745 = vunpack.c.l.b16 %v456
    %v746 = vunpack.c.h.b16 %v456
    %v747 = vunpack.c.l.b16 %v457
    %v748 = vunpack.c.h.b16 %v457
    %v749 = vunpack.c.l.b16 %v458
    %v750 = vunpack.c.h.b16 %v458
    %v751 = vunpack.c.l.b16 %v459
    %v752 = vunpack.c.h.b16 %v459
    %v753 = vunpack.c.l.b16 %v460
    %v754 = vunpack.c.h.b16 %v460
    %v755 = vunpack.c.l.b16 %v461
    %v756 = vunpack.c.h.b16 %v461
    %v757 = vunpack.c.l.b16 %v462
    %v758 = vunpack.c.h.b16 %v462
    %v759 = vunpack.c.l.b16 %v463
    %v760 = vunpack.c.h.b16 %v463
    %v761 = vunpack.c.l.b16 %v464
    %v762 = vunpack.c.h.b16 %v464
    %v763 = vunpack.c.l.b16 %v465
    %v764 = vunpack.c.h.b16 %v465
    %v765 = vunpack.c.l.b16 %v466
    %v766 = vunpack.c.h.b16 %v466
    %v767 = vunpack.c.l.b16 %v467
    %v768 = vunpack.c.h.b16 %v467
    %v769 = vunpack.c.l.b16 %v468
    %v770 = vunpack.c.h.b16 %v468
    %v771 = vunpack.c.l.b16 %v469
    %v772 = vunpack.c.h.b16 %v469
    %v773 = vunpack.c.l.b16 %v470
    %v774 = vunpack.c.h.b16 %v470
    %v775 = vunpack.c.l.b16 %v471
    %v776 = vunpack.c.h.b16 %v471
    %v777 = vunpack.c.l.b16 %v472
    %v778 = vunpack.c.h.b16 %v472
    %v779 = vunpack.c.l.b16 %v473
    %v780 = vunpack.c.h.b16 %v473
    %v781 = vunpack.c.l.b16 %v474
    %v782 = vunpack.c.h.b16 %v474
    %v783 = vunpack.c.l.b16 %v475
    %v784 = vunpack.c.h.b16 %v475
    %v785 = vunpack.c.l.b16 %v476
    %v786 = vunpack.c.h.b16 %v476
    %v787 = vunpack.c.l.b16 %v477
    %v788 = vunpack.c.h.b16 %v477
    %v789 = vunpack.c.l.b16 %v478
    %v790 = vunpack.c.h.b16 %v478
    %v791 = vunpack.c.l.b16 %v479
    %v792 = vunpack.c.h.b16 %v479
    %v793 = vunpack.c.l.b16 %v480
    %v794 = vunpack.c.h.b16 %v480
    %v795 = vunpack.c.l.b16 %v481
    %v796 = vunpack.c.h.b16 %v481
    %v797 = vunpack.c.l.b16 %v482
    %v798 = vunpack.c.h.b16 %v482
    %v799 = vunpack.c.l.b16 %v483
    %v800 = vunpack.c.h.b16 %v483
    %v801 = vunpack.c.l.b16 %v484
    %v802 = vunpack.c.h.b16 %v484
    %v803 = vunpack.c.l.b16 %v485
    %v804 = vunpack.c.h.b16 %v485
    %v805 = vunpack.c.l.b16 %v486
    %v806 = vunpack.c.h.b16 %v486
    %v807 = vunpack.c.l.b16 %v487
    %v808 = vunpack.c.h.b16 %v487
    %v809 = vunpack.c.l.b16 %v488
    %v810 = vunpack.c.h.b16 %v488
    %v811 = vunpack.c.l.b16 %v489
    %v812 = vunpack.c.h.b16 %v489
    %v813 = vunpack.c.l.b16 %v490
    %v814 = vunpack.c.h.b16 %v490
    %v815 = vunpack.c.l.b16 %v491
    %v816 = vunpack.c.h.b16 %v491
    %v817 = vunpack.c.l.b16 %v492
    %v818 = vunpack.c.h.b16 %v492
    %v819 = vunpack.c.l.b16 %v493
    %v820 = vunpack.c.h.b16 %v493
    %v821 = vunpack.c.l.b16 %v494
    %v822 = vunpack.c.h.b16 %v494
    %v823 = vunpack.c.l.b16 %v495
    %v824 = vunpack.c.h.b16 %v495
    %v825 = vunpack.c.l.b16 %v496
    %v826 = vunpack.c.h.b16 %v496
    %v827 = vunpack.c.l.b16 %v497
    %v828 = vunpack.c.h.b16 %v497
    %v829 = vunpack.c.l.b16 %v498
    %v830 = vunpack.c.h.b16 %v498
    %v831 = vunpack.c.l.b16 %v499
    %v832 = vunpack.c.h.b16 %v499
    %v833 = vunpack.c.l.b16 %v500
    %v834 = vunpack.c.h.b16 %v500
    %v835 = vunpack.c.l.b16 %v501
    %v836 = vunpack.c.h.b16 %v501
    %v837 = vunpack.c.l.b16 %v502
    %v838 = vunpack.c.h.b16 %v502
    %v839 = vunpack.c.l.b16 %v503
    %v840 = vunpack.c.h.b16 %v503
    %v841 = vunpack.c.l.b16 %v504
    %v842 = vunpack.c.h.b16 %v504
    %v843 = vunpack.c.l.b16 %v505
    %v844 = vunpack.c.h.b16 %v505
    %v845 = vunpack.c.l.b16 %v506
    %v846 = vunpack.c.h.b16 %v506
    %v847 = vunpack.c.l.b16 %v507
    %v848 = vunpack.c.h.b16 %v507
    %v849 = vunpack.c.l.b16 %v508
    %v850 = vunpack.c.h.b16 %v508
    %v851 = vunpack.c.l.b16 %v509
    %v852 = vunpack.c.h.b16 %v509
    %v853 = vunpack.c.l.b16 %v510
    %v854 = vunpack.c.h.b16 %v510
    %v855 = vunpack.c.l.b16 %v511
    %v856 = vunpack.c.h.b16 %v511
    %v857 = vunpack.c.l.b16 %v512
    %v858 = vunpack.c.h.b16 %v512
    %v859 = vunpack.c.l.b16 %v513
    %v860 = vunpack.c.h.b16 %v513
    %v861 = vunpack.c.l.b16 %v514
    %v862 = vunpack.c.h.b16 %v514
    %v863 = vunpack.c.l.b16 %v515
    %v864 = vunpack.c.h.b16 %v515
    %v865 = vunpack.c.l.b16 %v516
    %v866 = vunpack.c.h.b16 %v516
    %v867 = vunpack.c.l.b16 %v517
    %v868 = vunpack.c.h.b16 %v517
    %v869 = vunpack.c.l.b16 %v518
    %v870 = vunpack.c.h.b16 %v518
    %v871 = vunpack.c.l.b16 %v519
    %v872 = vunpack.c.h.b16 %v519
    %v873 = vunpack.c.l.b16 %v520
    %v874 = vunpack.c.h.b16 %v520
    %v875 = vunpack.c.l.b16 %v521
    %v876 = vunpack.c.h.b16 %v521
    %v877 = vunpack.c.l.b16 %v522
    %v878 = vunpack.c.h.b16 %v522
    %v879 = vunpack.c.l.b16 %v523
    %v880 = vunpack.c.h.b16 %v523
    %v881 = vunpack.c.l.b16 %v524
    %v882 = vunpack.c.h.b16 %v524
    %v883 = vunpack.c.l.b16 %v525
    %v884 = vunpack.c.h.b16 %v525
    %v885 = vunpack.c.l.b16 %v526
    %v886 = vunpack.c.h.b16 %v526
    %v887 = vunpack.c.l.b16 %v527
    %v888 = vunpack.c.h.b16 %v527
    %v889 = vunpack.c.l.b16 %v528
    %v890 = vunpack.c.h.b16 %v528
    %v891 = vunpack.c.l.b16 %v529
    %v892 = vunpack.c.h.b16 %v529
    %v893 = vunpack.c.l.b16 %v530
    %v894 = vunpack.c.h.b16 %v530
    %v895 = vunpack.c.l.b16 %v531
    %v896 = vunpack.c.h.b16 %v531
    %v897 = vunpack.c.l.b16 %v532
    %v898 = vunpack.c.h.b16 %v532
    %v899 = vunpack.c.l.b16 %v533
    %v900 = vunpack.c.h.b16 %v533
    %v901 = vunpack.c.l.b16 %v534
    %v902 = vunpack.c.h.b16 %v534
    %v903 = vunpack.c.l.b16 %v535
    %v904 = vunpack.c.h.b16 %v535
    %v905 = vunpack.c.l.b16 %v536
    %v906 = vunpack.c.h.b16 %v536
    %v907 = vunpack.c.l.b16 %v537
    %v908 = vunpack.c.h.b16 %v537
    %v909 = vunpack.c.l.b16 %v538
    %v910 = vunpack.c.h.b16 %v538
    %v911 = vunpack.c.l.b16 %v539
    %v912 = vunpack.c.h.b16 %v539
    %v913 = vunpack.c.l.b16 %v540
    %v914 = vunpack.c.h.b16 %v540
    %v915 = vunpack.c.l.b16 %v541
    %v916 = vunpack.c.h.b16 %v541
    %v917 = vunpack.c.l.b16 %v542
    %v918 = vunpack.c.h.b16 %v542
    %v919 = vunpack.c.l.b16 %v543
    %v920 = vunpack.c.h.b16 %v543
    %v921 = vunpack.c.l.b16 %v544
    %v922 = vunpack.c.h.b16 %v544
    %v923 = vunpack.c.l.b16 %v545
    %v924 = vunpack.c.h.b16 %v545
    %v925 = vunpack.c.l.b16 %v546
    %v926 = vunpack.c.h.b16 %v546
    %v927 = vunpack.c.l.b16 %v547
    %v928 = vunpack.c.h.b16 %v547
    %v929 = vunpack.c.l.b16 %v548
    %v930 = vunpack.c.h.b16 %v548
    %v931 = vunpack.c.l.b16 %v549
    %v932 = vunpack.c.h.b16 %v549
    %v933 = vunpack.c.l.b16 %v550
    %v934 = vunpack.c.h.b16 %v550
    %v935 = vpack.c.b16 %v683, %v679
    %v936 = vpack.c.b16 %v684, %v680
    %v937 = vpack.c.b16 %v685, %v681
    %v938 = vpack.c.b16 %v686, %v682
    %v939 = vpack.c.b16 %v691, %v687
    %v940 = vpack.c.b16 %v692, %v688
    %v941 = vpack.c.b16 %v693, %v689
    %v942 = vpack.c.b16 %v694, %v690
    %v943 = vpack.c.b16 %v699, %v695
    %v944 = vpack.c.b16 %v700, %v696
    %v945 = vpack.c.b16 %v701, %v697
    %v946 = vpack.c.b16 %v702, %v698
    %v947 = vpack.c.b16 %v707, %v703
    %v948 = vpack.c.b16 %v708, %v704
    %v949 = vpack.c.b16 %v709, %v705
    %v950 = vpack.c.b16 %v710, %v706
    %v951 = vpack.c.b16 %v715, %v711
    %v952 = vpack.c.b16 %v716, %v712
    %v953 = vpack.c.b16 %v717, %v713
    %v954 = vpack.c.b16 %v718, %v714
    %v955 = vpack.c.b16 %v723, %v719
    %v956 = vpack.c.b16 %v724, %v720
    %v957 = vpack.c.b16 %v725, %v721
    %v958 = vpack.c.b16 %v726, %v722
    %v959 = vpack.c.b16 %v731, %v727
    %v960 = vpack.c.b16 %v732, %v728
    %v961 = vpack.c.b16 %v733, %v729
    %v962 = vpack.c.b16 %v734, %v730
    %v963 = vpack.c.b16 %v739, %v735
    %v964 = vpack.c.b16 %v740, %v736
    %v965 = vpack.c.b16 %v741, %v737
    %v966 = vpack.c.b16 %v742, %v738
    %v967 = vpack.c.b16 %v747, %v743
    %v968 = vpack.c.b16 %v748, %v744
    %v969 = vpack.c.b16 %v749, %v745
    %v970 = vpack.c.b16 %v750, %v746
    %v971 = vpack.c.b16 %v755, %v751
    %v972 = vpack.c.b16 %v756, %v752
    %v973 = vpack.c.b16 %v757, %v753
    %v974 = vpack.c.b16 %v758, %v754
    %v975 = vpack.c.b16 %v763, %v759
    %v976 = vpack.c.b16 %v764, %v760
    %v977 = vpack.c.b16 %v765, %v761
    %v978 = vpack.c.b16 %v766, %v762
    %v979 = vpack.c.b16 %v771, %v767
    %v980 = vpack.c.b16 %v772, %v768
    %v981 = vpack.c.b16 %v773, %v769
    %v982 = vpack.c.b16 %v774, %v770
    %v983 = vpack.c.b16 %v779, %v775
    %v984 = vpack.c.b16 %v780, %v776
    %v985 = vpack.c.b16 %v781, %v777
    %v986 = vpack.c.b16 %v782, %v778
    %v987 = vpack.c.b16 %v787, %v783
    %v988 = vpack.c.b16 %v788, %v784
    %v989 = vpack.c.b16 %v789, %v785
    %v990 = vpack.c.b16 %v790, %v786
    %v991 = vpack.c.b16 %v795, %v791
    %v992 = vpack.c.b16 %v796, %v792
    %v993 = vpack.c.b16 %v797, %v793
    %v994 = vpack.c.b16 %v798, %v794
    %v995 = vpack.c.b16 %v803, %v799
    %v996 = vpack.c.b16 %v804, %v800
    %v997 = vpack.c.b16 %v805, %v801
    %v998 = vpack.c.b16 %v806, %v802
    %v999 = vpack.c.b16 %v811, %v807
    %v1000 = vpack.c.b16 %v812, %v808
    %v1001 = vpack.c.b16 %v813, %v809
    %v1002 = vpack.c.b16 %v814, %v810
    %v1003 = vpack.c.b16 %v819, %v815
    %v1004 = vpack.c.b16 %v820, %v816
    %v1005 = vpack.c.b16 %v821, %v817
    %v1006 = vpack.c.b16 %v822, %v818
    %v1007 = vpack.c.b16 %v827, %v823
    %v1008 = vpack.c.b16 %v828, %v824
    %v1009 = vpack.c.b16 %v829, %v825
    %v1010 = vpack.c.b16 %v830, %v826
    %v1011 = vpack.c.b16 %v835, %v831
    %v1012 = vpack.c.b16 %v836, %v832
    %v1013 = vpack.c.b16 %v837, %v833
    %v1014 = vpack.c.b16 %v838, %v834
    %v1015 = vpack.c.b16 %v843, %v839
    %v1016 = vpack.c.b16 %v844, %v840
    %v1017 = vpack.c.b16 %v845, %v841
    %v1018 = vpack.c.b16 %v846, %v842
    %v1019 = vpack.c.b16 %v851, %v847
    %v1020 = vpack.c.b16 %v852, %v848
    %v1021 = vpack.c.b16 %v853, %v849
    %v1022 = vpack.c.b16 %v854, %v850
    %v1023 = vpack.c.b16 %v859, %v855
    %v1024 = vpack.c.b16 %v860, %v856
    %v1025 = vpack.c.b16 %v861, %v857
    %v1026 = vpack.c.b16 %v862, %v858
    %v1027 = vpack.c.b16 %v867, %v863
    %v1028 = vpack.c.b16 %v868, %v864
    %v1029 = vpack.c.b16 %v869, %v865
    %v1030 = vpack.c.b16 %v870, %v866
    %v1031 = vpack.c.b16 %v875, %v871
    %v1032 = vpack.c.b16 %v876, %v872
    %v1033 = vpack.c.b16 %v877, %v873
    %v1034 = vpack.c.b16 %v878, %v874
    %v1035 = vpack.c.b16 %v883, %v879
    %v1036 = vpack.c.b16 %v884, %v880
    %v1037 = vpack.c.b16 %v885, %v881
    %v1038 = vpack.c.b16 %v886, %v882
    %v1039 = vpack.c.b16 %v891, %v887
    %v1040 = vpack.c.b16 %v892, %v888
    %v1041 = vpack.c.b16 %v893, %v889
    %v1042 = vpack.c.b16 %v894, %v890
    %v1043 = vpack.c.b16 %v899, %v895
    %v1044 = vpack.c.b16 %v900, %v896
    %v1045 = vpack.c.b16 %v901, %v897
    %v1046 = vpack.c.b16 %v902, %v898
    %v1047 = vpack.c.b16 %v907, %v903
    %v1048 = vpack.c.b16 %v908, %v904
    %v1049 = vpack.c.b16 %v909, %v905
    %v1050 = vpack.c.b16 %v910, %v906
    %v1051 = vpack.c.b16 %v915, %v911
    %v1052 = vpack.c.b16 %v916, %v912
    %v1053 = vpack.c.b16 %v917, %v913
    %v1054 = vpack.c.b16 %v918, %v914
    %v1055 = vpack.c.b16 %v923, %v919
    %v1056 = vpack.c.b16 %v924, %v920
    %v1057 = vpack.c.b16 %v925, %v921
    %v1058 = vpack.c.b16 %v926, %v922
    %v1059 = vpack.c.b16 %v931, %v927
    %v1060 = vpack.c.b16 %v932, %v928
    %v1061 = vpack.c.b16 %v933, %v929
    %v1062 = vpack.c.b16 %v934, %v930
    %1191 = vmatprep.subr.bf16.mxu0 %v936
    %1192 = vmatpush1.bf16.msra.mxu0 %v935
    %1193 = vmatprep.subr.bf16.mxu0 %v940
    %1194 = vmatpush1.bf16.msra.mxu0 %v939
    %1195 = vmatprep.subr.bf16.mxu0 %v944
    %1196 = vmatpush1.bf16.msra.mxu0 %v943
    %1197 = vmatprep.subr.bf16.mxu0 %v948
    %1198 = vmatpush1.bf16.msra.mxu0 %v947
    %1199 = vmatprep.subr.bf16.mxu0 %v952
    %1200 = vmatpush1.bf16.msra.mxu0 %v951
    %1201 = vmatprep.subr.bf16.mxu0 %v956
    %1202 = vmatpush1.bf16.msra.mxu0 %v955
    %1203 = vmatprep.subr.bf16.mxu0 %v960
    %1204 = vmatpush1.bf16.msra.mxu0 %v959
    %1205 = vmatprep.subr.bf16.mxu0 %v964
    %1206 = vmatpush1.bf16.msra.mxu0 %v963
    %1207 = vmatprep.subr.bf16.mxu0 %v968
    %1208 = vmatpush1.bf16.msra.mxu0 %v967
    %1209 = vmatprep.subr.bf16.mxu0 %v972
    %1210 = vmatpush1.bf16.msra.mxu0 %v971
    %1211 = vmatprep.subr.bf16.mxu0 %v976
    %1212 = vmatpush1.bf16.msra.mxu0 %v975
    %1213 = vmatprep.subr.bf16.mxu0 %v980
    %1214 = vmatpush1.bf16.msra.mxu0 %v979
    %1215 = vmatprep.subr.bf16.mxu0 %v984
    %1216 = vmatpush1.bf16.msra.mxu0 %v983
    %1217 = vmatprep.subr.bf16.mxu0 %v988
    %1218 = vmatpush1.bf16.msra.mxu0 %v987
    %1219 = vmatprep.subr.bf16.mxu0 %v992
    %1220 = vmatpush1.bf16.msra.mxu0 %v991
    %1221 = vmatprep.subr.bf16.mxu0 %v996
    %1222 = vmatpush1.bf16.msra.mxu0 %v995
    %1223 = vmatprep.mubr.bf16.mxu0 %v420
    %1224 = vmatmul.mubr.bf16.gmra.mrb[0].mxu0 %v419
    %v1225 = vpop.f32.mrb[0].mxu0
    %v1226 = vadd.f32 0.0, %v1225
    %v1227 = vpop.f32.mrb[0].mxu0
    %v1228 = vadd.f32 0.0, %v1227
    %v1229 = vpop.f32.mrb[0].mxu0
    %v1230 = vpop.f32.mrb[0].mxu0
    %1231 = vdwg.mxu0
    %1232 = vmatprep.subr.bf16.mxu0 %v1000
    %1233 = vmatpush1.bf16.msra.mxu0 %v999
    %1234 = vmatprep.subr.bf16.mxu0 %v1004
    %1235 = vmatpush1.bf16.msra.mxu0 %v1003
    %1236 = vmatprep.subr.bf16.mxu0 %v1008
    %1237 = vmatpush1.bf16.msra.mxu0 %v1007
    %1238 = vmatprep.subr.bf16.mxu0 %v1012
    %1239 = vmatpush1.bf16.msra.mxu0 %v1011
    %1240 = vmatprep.subr.bf16.mxu0 %v1016
    %1241 = vmatpush1.bf16.msra.mxu0 %v1015
    %1242 = vmatprep.subr.bf16.mxu0 %v1020
    %1243 = vmatpush1.bf16.msra.mxu0 %v1019
    %1244 = vmatprep.subr.bf16.mxu0 %v1024
    %1245 = vmatpush1.bf16.msra.mxu0 %v1023
    %1246 = vmatprep.subr.bf16.mxu0 %v1028
    %1247 = vmatpush1.bf16.msra.mxu0 %v1027
    %1248 = vmatprep.subr.bf16.mxu0 %v1032
    %1249 = vmatpush1.bf16.msra.mxu0 %v1031
    %1250 = vmatprep.subr.bf16.mxu0 %v1036
    %1251 = vmatpush1.bf16.msra.mxu0 %v1035
    %1252 = vmatprep.subr.bf16.mxu0 %v1040
    %1253 = vmatpush1.bf16.msra.mxu0 %v1039
    %1254 = vmatprep.subr.bf16.mxu0 %v1044
    %1255 = vmatpush1.bf16.msra.mxu0 %v1043
    %1256 = vmatprep.subr.bf16.mxu0 %v1048
    %1257 = vmatpush1.bf16.msra.mxu0 %v1047
    %1258 = vmatprep.subr.bf16.mxu0 %v1052
    %1259 = vmatpush1.bf16.msra.mxu0 %v1051
    %1260 = vmatprep.subr.bf16.mxu0 %v1056
    %1261 = vmatpush1.bf16.msra.mxu0 %v1055
    %1262 = vmatprep.subr.bf16.mxu0 %v1060
    %1263 = vmatpush1.bf16.msra.mxu0 %v1059
    %1264 = vmatprep.mubr.bf16.mxu0 %v422
    %1265 = vmatmul.mubr.bf16.gmra.mrb[0].mxu0 %v421
    %v1266 = vpop.f32.mrb[0].mxu0
    %v1267 = vadd.f32 %v1226, %v1266
    %v1268 = vpop.f32.mrb[0].mxu0
    %v1269 = vadd.f32 %v1228, %v1268
    %v1270 = vpop.f32.mrb[0].mxu0
    %v1271 = vpop.f32.mrb[0].mxu0
    %1272 = vdwg.mxu0
    %1273 = vmatprep.subr.bf16.mxu0 %v938
    %1274 = vmatpush1.bf16.msra.mxu0 %v937
    %1275 = vmatprep.subr.bf16.mxu0 %v942
    %1276 = vmatpush1.bf16.msra.mxu0 %v941
    %1277 = vmatprep.subr.bf16.mxu0 %v946
    %1278 = vmatpush1.bf16.msra.mxu0 %v945
    %1279 = vmatprep.subr.bf16.mxu0 %v950
    %1280 = vmatpush1.bf16.msra.mxu0 %v949
    %1281 = vmatprep.subr.bf16.mxu0 %v954
    %1282 = vmatpush1.bf16.msra.mxu0 %v953
    %1283 = vmatprep.subr.bf16.mxu0 %v958
    %1284 = vmatpush1.bf16.msra.mxu0 %v957
    %1285 = vmatprep.subr.bf16.mxu0 %v962
    %1286 = vmatpush1.bf16.msra.mxu0 %v961
    %1287 = vmatprep.subr.bf16.mxu0 %v966
    %1288 = vmatpush1.bf16.msra.mxu0 %v965
    %1289 = vmatprep.subr.bf16.mxu0 %v970
    %1290 = vmatpush1.bf16.msra.mxu0 %v969
    %1291 = vmatprep.subr.bf16.mxu0 %v974
    %1292 = vmatpush1.bf16.msra.mxu0 %v973
    %1293 = vmatprep.subr.bf16.mxu0 %v978
    %1294 = vmatpush1.bf16.msra.mxu0 %v977
    %1295 = vmatprep.subr.bf16.mxu0 %v982
    %1296 = vmatpush1.bf16.msra.mxu0 %v981
    %1297 = vmatprep.subr.bf16.mxu0 %v986
    %1298 = vmatpush1.bf16.msra.mxu0 %v985
    %1299 = vmatprep.subr.bf16.mxu0 %v990
    %1300 = vmatpush1.bf16.msra.mxu0 %v989
    %1301 = vmatprep.subr.bf16.mxu0 %v994
    %1302 = vmatpush1.bf16.msra.mxu0 %v993
    %1303 = vmatprep.subr.bf16.mxu0 %v998
    %1304 = vmatpush1.bf16.msra.mxu0 %v997
    %1305 = vmatprep.mubr.bf16.mxu0 %v420
    %1306 = vmatmul.mubr.bf16.gmra.mrb[0].mxu0 %v419
    %v1307 = vpop.f32.mrb[0].mxu0
    %v1308 = vadd.f32 0.0, %v1307
    %v1309 = vpop.f32.mrb[0].mxu0
    %v1310 = vadd.f32 0.0, %v1309
    %v1311 = vpop.f32.mrb[0].mxu0
    %v1312 = vpop.f32.mrb[0].mxu0
    %1313 = vdwg.mxu0
    %1314 = vmatprep.subr.bf16.mxu0 %v1002
    %1315 = vmatpush1.bf16.msra.mxu0 %v1001
    %1316 = vmatprep.subr.bf16.mxu0 %v1006
    %1317 = vmatpush1.bf16.msra.mxu0 %v1005
    %1318 = vmatprep.subr.bf16.mxu0 %v1010
    %1319 = vmatpush1.bf16.msra.mxu0 %v1009
    %1320 = vmatprep.subr.bf16.mxu0 %v1014
    %1321 = vmatpush1.bf16.msra.mxu0 %v1013
    %1322 = vmatprep.subr.bf16.mxu0 %v1018
    %1323 = vmatpush1.bf16.msra.mxu0 %v1017
    %1324 = vmatprep.subr.bf16.mxu0 %v1022
    %1325 = vmatpush1.bf16.msra.mxu0 %v1021
    %1326 = vmatprep.subr.bf16.mxu0 %v1026
    %1327 = vmatpush1.bf16.msra.mxu0 %v1025
    %1328 = vmatprep.subr.bf16.mxu0 %v1030
    %1329 = vmatpush1.bf16.msra.mxu0 %v1029
    %1330 = vmatprep.subr.bf16.mxu0 %v1034
    %1331 = vmatpush1.bf16.msra.mxu0 %v1033
    %1332 = vmatprep.subr.bf16.mxu0 %v1038
    %1333 = vmatpush1.bf16.msra.mxu0 %v1037
    %1334 = vmatprep.subr.bf16.mxu0 %v1042
    %1335 = vmatpush1.bf16.msra.mxu0 %v1041
    %1336 = vmatprep.subr.bf16.mxu0 %v1046
    %1337 = vmatpush1.bf16.msra.mxu0 %v1045
    %1338 = vmatprep.subr.bf16.mxu0 %v1050
    %1339 = vmatpush1.bf16.msra.mxu0 %v1049
    %1340 = vmatprep.subr.bf16.mxu0 %v1054
    %1341 = vmatpush1.bf16.msra.mxu0 %v1053
    %1342 = vmatprep.subr.bf16.mxu0 %v1058
    %1343 = vmatpush1.bf16.msra.mxu0 %v1057
    %1344 = vmatprep.subr.bf16.mxu0 %v1062
    %1345 = vmatpush1.bf16.msra.mxu0 %v1061
    %1346 = vmatprep.mubr.bf16.mxu0 %v422
    %1347 = vmatmul.mubr.bf16.gmra.mrb[0].mxu0 %v421
    %v1348 = vpop.f32.mrb[0].mxu0
    %v1349 = vadd.f32 %v1308, %v1348
    %v1350 = vpop.f32.mrb[0].mxu0
    %v1351 = vadd.f32 %v1310, %v1350
    %v1352 = vpop.f32.mrb[0].mxu0
    %v1353 = vpop.f32.mrb[0].mxu0
    %1354 = vdwg.mxu0
    %v1355 = vpack.c.bf16 %v1267, %v1267
    %v1356 = vpack.c.bf16 %v1269, %v1269
    %v1357 = vpack.c.bf16 %v1349, %v1349
    %v1358 = vpack.c.bf16 %v1351, %v1351
    %v1359 = vld [vmem:[%s4] sm:$0xf]
    %v1362 = vunpack.c.l.s4 1966171168
    %v1363 = vunpack.c.0.s8 %v1362
    %v1364 = vlaneseq
    %v1365 = vshrl.u32 %v1364, 7
    %v1366 = vsub.s32 %v1363, %v1365
    %v1367 = vrot.slane %v1359, %v1366
    %v1368 = vcombine.high %v1367, %v1367
    %v1370 = vunpack.c.l.s4 1966171168
    %v1371 = vunpack.c.0.s8 %v1370
    %v1372 = vlaneseq
    %v1373 = vshrl.u32 %v1372, 7
    %v1374 = vsub.s32 %v1371, %v1373
    %v1375 = vrot.slane %v1367, %v1374
    %v1377 = vunpack.c.l.s4 1966171168
    %v1378 = vunpack.c.0.s8 %v1377
    %v1379 = vlaneseq
    %v1380 = vshrl.u32 %v1379, 7
    %v1381 = vsub.s32 %v1378, %v1380
    %v1382 = vrot.slane %v1368, %v1381
    %v1383 = vcombine.high %v1375, %v1375
    %v1384 = vcombine.high %v1382, %v1382
    %v1386 = vpack.i.b16 %v1375, %v1375
    %v1388 = vlaneseq
    %v1389 = vshrl.u32 %v1388, 7
    %v1390 = vsub.s32 0, %v1389
    %v1391 = vrot.slane %v1386, %v1390
    %v1393 = vpack.i.b16 %v1382, %v1382
    %v1395 = vlaneseq
    %v1396 = vshrl.u32 %v1395, 7
    %v1397 = vsub.s32 0, %v1396
    %v1398 = vrot.slane %v1393, %v1397
    %v1400 = vpack.i.b16 %v1383, %v1383
    %v1402 = vlaneseq
    %v1403 = vshrl.u32 %v1402, 7
    %v1404 = vsub.s32 0, %v1403
    %v1405 = vrot.slane %v1400, %v1404
    %v1407 = vpack.i.b16 %v1384, %v1384
    %v1409 = vlaneseq
    %v1410 = vshrl.u32 %v1409, 7
    %v1411 = vsub.s32 0, %v1410
    %v1412 = vrot.slane %v1407, %v1411
    %v1413 = vadd.bf16 %v1355, %v1391
    %v1414 = vadd.bf16 %v1356, %v1398
    %v1415 = vadd.bf16 %v1357, %v1405
    %v1416 = vadd.bf16 %v1358, %v1412
    %v1417 = vmax.bf16 %v1413, 0
    %v1418 = vmax.bf16 %v1414, 0
    %v1419 = vmax.bf16 %v1415, 0
    %v1420 = vmax.bf16 %v1416, 0
    %v1421 = vld [vmem:[#allocation8] sm:$0xf]
    %v1422 = vld [vmem:[#allocation8 + $0x4] sm:$0xf]
    %v1423 = vld [vmem:[#allocation8 + $0x8] sm:$0xf]
    %v1424 = vld [vmem:[#allocation8 + $0xc] sm:$0xf]
    %v1425 = vld [vmem:[#allocation8 + $0x10] sm:$0xf]
    %v1426 = vld [vmem:[#allocation8 + $0x14] sm:$0xf]
    %v1427 = vld [vmem:[#allocation8 + $0x18] sm:$0xf]
    %v1428 = vld [vmem:[#allocation8 + $0x1c] sm:$0xf]
    %v1429 = vld [vmem:[#allocation8 + $0x20] sm:$0xf]
    %v1430 = vld [vmem:[#allocation8 + $0x24] sm:$0xf]
    %v1431 = vld [vmem:[#allocation8 + $0x28] sm:$0xf]
    %v1432 = vld [vmem:[#allocation8 + $0x2c] sm:$0xf]
    %v1433 = vld [vmem:[#allocation8 + $0x30] sm:$0xf]
    %v1434 = vld [vmem:[#allocation8 + $0x34] sm:$0xf]
    %v1435 = vld [vmem:[#allocation8 + $0x38] sm:$0xf]
    %v1436 = vld [vmem:[#allocation8 + $0x3c] sm:$0xf]
    %v1437 = vld [vmem:[#allocation8 + $0x40] sm:$0xf]
    %v1438 = vld [vmem:[#allocation8 + $0x44] sm:$0xf]
    %v1439 = vld [vmem:[#allocation8 + $0x48] sm:$0xf]
    %v1440 = vld [vmem:[#allocation8 + $0x4c] sm:$0xf]
    %v1441 = vld [vmem:[#allocation8 + $0x50] sm:$0xf]
    %v1442 = vld [vmem:[#allocation8 + $0x54] sm:$0xf]
    %v1443 = vld [vmem:[#allocation8 + $0x58] sm:$0xf]
    %v1444 = vld [vmem:[#allocation8 + $0x5c] sm:$0xf]
    %v1445 = vld [vmem:[#allocation8 + $0x60] sm:$0xf]
    %v1446 = vld [vmem:[#allocation8 + $0x64] sm:$0xf]
    %v1447 = vld [vmem:[#allocation8 + $0x68] sm:$0xf]
    %v1448 = vld [vmem:[#allocation8 + $0x6c] sm:$0xf]
    %v1449 = vld [vmem:[#allocation8 + $0x70] sm:$0xf]
    %v1450 = vld [vmem:[#allocation8 + $0x74] sm:$0xf]
    %v1451 = vld [vmem:[#allocation8 + $0x78] sm:$0xf]
    %v1452 = vld [vmem:[#allocation8 + $0x7c] sm:$0xf]
    %v1453 = vld [vmem:[#allocation8 + $0x80] sm:$0xf]
    %v1454 = vld [vmem:[#allocation8 + $0x84] sm:$0xf]
    %v1455 = vld [vmem:[#allocation8 + $0x88] sm:$0xf]
    %v1456 = vld [vmem:[#allocation8 + $0x8c] sm:$0xf]
    %v1457 = vld [vmem:[#allocation8 + $0x90] sm:$0xf]
    %v1458 = vld [vmem:[#allocation8 + $0x94] sm:$0xf]
    %v1459 = vld [vmem:[#allocation8 + $0x98] sm:$0xf]
    %v1460 = vld [vmem:[#allocation8 + $0x9c] sm:$0xf]
    %v1461 = vld [vmem:[#allocation8 + $0xa0] sm:$0xf]
    %v1462 = vld [vmem:[#allocation8 + $0xa4] sm:$0xf]
    %v1463 = vld [vmem:[#allocation8 + $0xa8] sm:$0xf]
    %v1464 = vld [vmem:[#allocation8 + $0xac] sm:$0xf]
    %v1465 = vld [vmem:[#allocation8 + $0xb0] sm:$0xf]
    %v1466 = vld [vmem:[#allocation8 + $0xb4] sm:$0xf]
    %v1467 = vld [vmem:[#allocation8 + $0xb8] sm:$0xf]
    %v1468 = vld [vmem:[#allocation8 + $0xbc] sm:$0xf]
    %v1469 = vld [vmem:[#allocation8 + $0xc0] sm:$0xf]
    %v1470 = vld [vmem:[#allocation8 + $0xc4] sm:$0xf]
    %v1471 = vld [vmem:[#allocation8 + $0xc8] sm:$0xf]
    %v1472 = vld [vmem:[#allocation8 + $0xcc] sm:$0xf]
    %v1473 = vld [vmem:[#allocation8 + $0xd0] sm:$0xf]
    %v1474 = vld [vmem:[#allocation8 + $0xd4] sm:$0xf]
    %v1475 = vld [vmem:[#allocation8 + $0xd8] sm:$0xf]
    %v1476 = vld [vmem:[#allocation8 + $0xdc] sm:$0xf]
    %v1477 = vld [vmem:[#allocation8 + $0xe0] sm:$0xf]
    %v1478 = vld [vmem:[#allocation8 + $0xe4] sm:$0xf]
    %v1479 = vld [vmem:[#allocation8 + $0xe8] sm:$0xf]
    %v1480 = vld [vmem:[#allocation8 + $0xec] sm:$0xf]
    %v1481 = vld [vmem:[#allocation8 + $0xf0] sm:$0xf]
    %v1482 = vld [vmem:[#allocation8 + $0xf4] sm:$0xf]
    %v1483 = vld [vmem:[#allocation8 + $0xf8] sm:$0xf]
    %v1484 = vld [vmem:[#allocation8 + $0xfc] sm:$0xf]
    %v1485 = vld [vmem:[%s6] sm:$0x1]
    %v1487 = vlaneseq
    %v1488 = vshrl.u32 %v1487, 7
    %v1489 = vsub.s32 0, %v1488
    %v1490 = vrot.slane %v1485, %v1489
    %v1556 = vunpack.c.l.b16 %v1421
    %v1557 = vunpack.c.l.b16 %v1422
    %v1558 = vunpack.c.l.b16 %v1423
    %v1559 = vunpack.c.l.b16 %v1424
    %v1560 = vunpack.c.l.b16 %v1425
    %v1561 = vunpack.c.l.b16 %v1426
    %v1562 = vunpack.c.l.b16 %v1427
    %v1563 = vunpack.c.l.b16 %v1428
    %v1564 = vunpack.c.l.b16 %v1429
    %v1565 = vunpack.c.l.b16 %v1430
    %v1566 = vunpack.c.l.b16 %v1431
    %v1567 = vunpack.c.l.b16 %v1432
    %v1568 = vunpack.c.l.b16 %v1433
    %v1569 = vunpack.c.l.b16 %v1434
    %v1570 = vunpack.c.l.b16 %v1435
    %v1571 = vunpack.c.l.b16 %v1436
    %v1572 = vunpack.c.l.b16 %v1437
    %v1573 = vunpack.c.l.b16 %v1438
    %v1574 = vunpack.c.l.b16 %v1439
    %v1575 = vunpack.c.l.b16 %v1440
    %v1576 = vunpack.c.l.b16 %v1441
    %v1577 = vunpack.c.l.b16 %v1442
    %v1578 = vunpack.c.l.b16 %v1443
    %v1579 = vunpack.c.l.b16 %v1444
    %v1580 = vunpack.c.l.b16 %v1445
    %v1581 = vunpack.c.l.b16 %v1446
    %v1582 = vunpack.c.l.b16 %v1447
    %v1583 = vunpack.c.l.b16 %v1448
    %v1584 = vunpack.c.l.b16 %v1449
    %v1585 = vunpack.c.l.b16 %v1450
    %v1586 = vunpack.c.l.b16 %v1451
    %v1587 = vunpack.c.l.b16 %v1452
    %v1588 = vunpack.c.l.b16 %v1453
    %v1589 = vunpack.c.l.b16 %v1454
    %v1590 = vunpack.c.l.b16 %v1455
    %v1591 = vunpack.c.l.b16 %v1456
    %v1592 = vunpack.c.l.b16 %v1457
    %v1593 = vunpack.c.l.b16 %v1458
    %v1594 = vunpack.c.l.b16 %v1459
    %v1595 = vunpack.c.l.b16 %v1460
    %v1596 = vunpack.c.l.b16 %v1461
    %v1597 = vunpack.c.l.b16 %v1462
    %v1598 = vunpack.c.l.b16 %v1463
    %v1599 = vunpack.c.l.b16 %v1464
    %v1600 = vunpack.c.l.b16 %v1465
    %v1601 = vunpack.c.l.b16 %v1466
    %v1602 = vunpack.c.l.b16 %v1467
    %v1603 = vunpack.c.l.b16 %v1468
    %v1604 = vunpack.c.l.b16 %v1469
    %v1605 = vunpack.c.l.b16 %v1470
    %v1606 = vunpack.c.l.b16 %v1471
    %v1607 = vunpack.c.l.b16 %v1472
    %v1608 = vunpack.c.l.b16 %v1473
    %v1609 = vunpack.c.l.b16 %v1474
    %v1610 = vunpack.c.l.b16 %v1475
    %v1611 = vunpack.c.l.b16 %v1476
    %v1612 = vunpack.c.l.b16 %v1477
    %v1613 = vunpack.c.l.b16 %v1478
    %v1614 = vunpack.c.l.b16 %v1479
    %v1615 = vunpack.c.l.b16 %v1480
    %v1616 = vunpack.c.l.b16 %v1481
    %v1617 = vunpack.c.l.b16 %v1482
    %v1618 = vunpack.c.l.b16 %v1483
    %v1619 = vunpack.c.l.b16 %v1484
    %v1620 = vpack.c.b16 %v1557, %v1556
    %v1621 = vpack.c.b16 %v1559, %v1558
    %v1622 = vpack.c.b16 %v1561, %v1560
    %v1623 = vpack.c.b16 %v1563, %v1562
    %v1624 = vpack.c.b16 %v1565, %v1564
    %v1625 = vpack.c.b16 %v1567, %v1566
    %v1626 = vpack.c.b16 %v1569, %v1568
    %v1627 = vpack.c.b16 %v1571, %v1570
    %v1628 = vpack.c.b16 %v1573, %v1572
    %v1629 = vpack.c.b16 %v1575, %v1574
    %v1630 = vpack.c.b16 %v1577, %v1576
    %v1631 = vpack.c.b16 %v1579, %v1578
    %v1632 = vpack.c.b16 %v1581, %v1580
    %v1633 = vpack.c.b16 %v1583, %v1582
    %v1634 = vpack.c.b16 %v1585, %v1584
    %v1635 = vpack.c.b16 %v1587, %v1586
    %v1636 = vpack.c.b16 %v1589, %v1588
    %v1637 = vpack.c.b16 %v1591, %v1590
    %v1638 = vpack.c.b16 %v1593, %v1592
    %v1639 = vpack.c.b16 %v1595, %v1594
    %v1640 = vpack.c.b16 %v1597, %v1596
    %v1641 = vpack.c.b16 %v1599, %v1598
    %v1642 = vpack.c.b16 %v1601, %v1600
    %v1643 = vpack.c.b16 %v1603, %v1602
    %v1644 = vpack.c.b16 %v1605, %v1604
    %v1645 = vpack.c.b16 %v1607, %v1606
    %v1646 = vpack.c.b16 %v1609, %v1608
    %v1647 = vpack.c.b16 %v1611, %v1610
    %v1648 = vpack.c.b16 %v1613, %v1612
    %v1649 = vpack.c.b16 %v1615, %v1614
    %v1650 = vpack.c.b16 %v1617, %v1616
    %v1651 = vpack.c.b16 %v1619, %v1618
    %1684 = vmatprep.subr.bf16.mxu0 0
    %1685 = vmatpush1.bf16.msra.mxu0 %v1620
    %1686 = vmatprep.subr.bf16.mxu0 0
    %1687 = vmatpush1.bf16.msra.mxu0 %v1621
    %1688 = vmatprep.subr.bf16.mxu0 0
    %1689 = vmatpush1.bf16.msra.mxu0 %v1622
    %1690 = vmatprep.subr.bf16.mxu0 0
    %1691 = vmatpush1.bf16.msra.mxu0 %v1623
    %1692 = vmatprep.subr.bf16.mxu0 0
    %1693 = vmatpush1.bf16.msra.mxu0 %v1624
    %1694 = vmatprep.subr.bf16.mxu0 0
    %1695 = vmatpush1.bf16.msra.mxu0 %v1625
    %1696 = vmatprep.subr.bf16.mxu0 0
    %1697 = vmatpush1.bf16.msra.mxu0 %v1626
    %1698 = vmatprep.subr.bf16.mxu0 0
    %1699 = vmatpush1.bf16.msra.mxu0 %v1627
    %1700 = vmatprep.subr.bf16.mxu0 0
    %1701 = vmatpush1.bf16.msra.mxu0 %v1628
    %1702 = vmatprep.subr.bf16.mxu0 0
    %1703 = vmatpush1.bf16.msra.mxu0 %v1629
    %1704 = vmatprep.subr.bf16.mxu0 0
    %1705 = vmatpush1.bf16.msra.mxu0 %v1630
    %1706 = vmatprep.subr.bf16.mxu0 0
    %1707 = vmatpush1.bf16.msra.mxu0 %v1631
    %1708 = vmatprep.subr.bf16.mxu0 0
    %1709 = vmatpush1.bf16.msra.mxu0 %v1632
    %1710 = vmatprep.subr.bf16.mxu0 0
    %1711 = vmatpush1.bf16.msra.mxu0 %v1633
    %1712 = vmatprep.subr.bf16.mxu0 0
    %1713 = vmatpush1.bf16.msra.mxu0 %v1634
    %1714 = vmatprep.subr.bf16.mxu0 0
    %1715 = vmatpush1.bf16.msra.mxu0 %v1635
    %1716 = vmatprep.mubr.bf16.mxu0 %v1418
    %1717 = vmatmul.mubr.bf16.gmra.mrb[0].mxu0 %v1417
    %v1718 = vpop.f32.mrb[0].mxu0
    %v1719 = vadd.f32 %v1490, %v1718
    %v1720 = vpop.f32.mrb[0].mxu0
    %v1721 = vpop.f32.mrb[0].mxu0
    %v1722 = vpop.f32.mrb[0].mxu0
    %1723 = vdwg.mxu0
    %1724 = vmatprep.subr.bf16.mxu0 0
    %1725 = vmatpush1.bf16.msra.mxu0 %v1636
    %1726 = vmatprep.subr.bf16.mxu0 0
    %1727 = vmatpush1.bf16.msra.mxu0 %v1637
    %1728 = vmatprep.subr.bf16.mxu0 0
    %1729 = vmatpush1.bf16.msra.mxu0 %v1638
    %1730 = vmatprep.subr.bf16.mxu0 0
    %1731 = vmatpush1.bf16.msra.mxu0 %v1639
    %1732 = vmatprep.subr.bf16.mxu0 0
    %1733 = vmatpush1.bf16.msra.mxu0 %v1640
    %1734 = vmatprep.subr.bf16.mxu0 0
    %1735 = vmatpush1.bf16.msra.mxu0 %v1641
    %1736 = vmatprep.subr.bf16.mxu0 0
    %1737 = vmatpush1.bf16.msra.mxu0 %v1642
    %1738 = vmatprep.subr.bf16.mxu0 0
    %1739 = vmatpush1.bf16.msra.mxu0 %v1643
    %1740 = vmatprep.subr.bf16.mxu0 0
    %1741 = vmatpush1.bf16.msra.mxu0 %v1644
    %1742 = vmatprep.subr.bf16.mxu0 0
    %1743 = vmatpush1.bf16.msra.mxu0 %v1645
    %1744 = vmatprep.subr.bf16.mxu0 0
    %1745 = vmatpush1.bf16.msra.mxu0 %v1646
    %1746 = vmatprep.subr.bf16.mxu0 0
    %1747 = vmatpush1.bf16.msra.mxu0 %v1647
    %1748 = vmatprep.subr.bf16.mxu0 0
    %1749 = vmatpush1.bf16.msra.mxu0 %v1648
    %1750 = vmatprep.subr.bf16.mxu0 0
    %1751 = vmatpush1.bf16.msra.mxu0 %v1649
    %1752 = vmatprep.subr.bf16.mxu0 0
    %1753 = vmatpush1.bf16.msra.mxu0 %v1650
    %1754 = vmatprep.subr.bf16.mxu0 0
    %1755 = vmatpush1.bf16.msra.mxu0 %v1651
    %1756 = vmatprep.mubr.bf16.mxu0 %v1420
    %1757 = vmatmul.mubr.bf16.gmra.mrb[0].mxu0 %v1419
    %v1758 = vpop.f32.mrb[0].mxu0
    %v1759 = vadd.f32 %v1719, %v1758
    %v1760 = vpop.f32.mrb[0].mxu0
    %v1761 = vpop.f32.mrb[0].mxu0
    %v1762 = vpop.f32.mrb[0].mxu0
    %1763 = vdwg.mxu0
    %v1764 = vxor.u32 %v1759, 2147483648
    %v1765 = vmul.f32 %v1764, 1.442695
    %v1766 = vpow.pop %v1765
    %v1767 = vadd.f32 %v1766, 1.0
    %v1768 = vrcp.pop %v1767
    %v1769 = vmul.f32 1.0, %v1768
    %1770 = vst [vmem:[#allocation10] sm:$0xff] %v1769
    // Predicated region
    $region46: #{tpu_custom_call.1} parent=1 // pred_check
      _
    $region47: #{tpu_custom_call.1} parent=1 // pred_check_branch
      %1772 = sbr.rel (0) target = $region49
    $region48: #{tpu_custom_call.1} parent=1 // pred_region
      %s1774 = ssub.s32 128, 128
      %1775 = vsyncadd [#allocation4], %s1774
      %s1777 = sshll.u32 [#allocation10], 4
      %s1778 = int_to_ptr.vmem [resolvable:$true] %s1777
      %1780 = dma.vmem_to_hbm [thread:$0]  %s1778, 128, %s7, [#allocation4]
    $region49: #{tpu_custom_call.1} parent=1 // pred_fallthru
      _
    // Predicated region
    $region50: #{tpu_custom_call.1} parent=1 // pred_check
      _
    $region51: #{tpu_custom_call.1} parent=1 // pred_check_branch
      %1782 = sbr.rel (0) target = $region53
    $region52: #{tpu_custom_call.1} parent=1 // pred_region
      %1783 = dma.done [#allocation4], 128
    $region53: #{tpu_custom_call.1} parent=1 // pred_fallthru
      _
    %1784 = vsyncpa [#allocation3], 1
    %1785 = vsyncpa [#allocation6], 1
    %1786 = vsyncpa [#allocation9], 1
    %1787 = vsyncpa [#allocation4], 1

</llo_original>
